<compile_context>
chip_gen: v7x
topology: tpu7x:2x2x1
jax: 0.10.0
libtpu: 0.0.40
codegen_flags: <defaults>
</compile_context>

<pallas_src>
import numpy as np

import jax
import jax.numpy as jnp
from jax.experimental import pallas as pl
from jax.experimental.pallas import tpu as pltpu


# ----------------------------------------------------------------------------
# constants / helpers
# ----------------------------------------------------------------------------
_CLF_MEAN = jnp.array([0.485, 0.456, 0.406], jnp.float32)
_CLF_STD = jnp.array([0.229, 0.224, 0.225], jnp.float32)

# Stand-in architecture config (static: strides / pads / kernel sizes).
_F1 = dict(k=3, stride=2, pad=1)
_F2 = dict(k=3, stride=2, pad=1)


def _round_up(x, m):
    return ((x + m - 1) // m) * m


def _im2col_nchw(x, k, stride, pad):
    """x: (N, C, H, W) -> (N, Ho*Wo, C*k*k), columns in (C, kh, kw) order.

    Pure data rearrangement in the wrapper (XLA fuses it with the norm affine
    and the bf16 cast); rows are ho*Wo + wo, row-major spatial.
    """
    N, C, H, W = x.shape
    xp = jnp.pad(x, ((0, 0), (0, 0), (pad, pad), (pad, pad)))
    Ho = (H + 2 * pad - k) // stride + 1
    Wo = (W + 2 * pad - k) // stride + 1
    taps = [xp[:, :, i:i + stride * Ho:stride, j:j + stride * Wo:stride]
            for i in range(k) for j in range(k)]
    patches = jnp.stack(taps, axis=-1)                  # (N, C, Ho, Wo, k*k)
    patches = jnp.transpose(patches, (0, 2, 3, 1, 4))   # (N, Ho, Wo, C, k*k)
    return patches.reshape(N, Ho * Wo, C * k * k), C * k * k


def _tap_selectors(Hin, Win, Hout, Wout, k, stride, pad):
    """0/1 selection matrices (k*k, Hout*Wout, Hin*Win) for an in-kernel
    sum-over-taps convolution.  Rows for taps that fall in the zero-padded
    border are all-zero (== zero padding).  Built with numpy at trace time."""
    sel = np.zeros((k * k, Hout * Wout, Hin * Win), np.float32)
    for kh in range(k):
        for kw in range(k):
            t = kh * k + kw
            for ho in range(Hout):
                for wo in range(Wout):
                    hi = ho * stride + kh - pad
                    wi = wo * stride + kw - pad
                    if 0 <= hi < Hin and 0 <= wi < Win:
                        sel[t, ho * Wout + wo, hi * Win + wi] = 1.0
    return jnp.asarray(sel, jnp.bfloat16)


# ----------------------------------------------------------------------------
# The single fused kernel: conv1 + ReLU -> conv2 + ReLU -> flatten -> Linear
# + ReLU, one image per grid step, everything resident in VMEM.
# ----------------------------------------------------------------------------
def _fused_forward_kernel(a1_ref, w1_ref, b1_ref, sel_ref, w2_ref, b2_ref,
                          w3_ref, b3_ref, o_ref):
    taps, n_sp2, _ = sel_ref.shape          # (k*k, S2, M1)
    c2 = w2_ref.shape[-1]
    cp3 = w3_ref.shape[-1]

    # ---- conv1 + ReLU: one matmul on this image's im2col patch matrix -----
    h1 = jnp.dot(a1_ref[0], w1_ref[...],               # (M1,K1p)@(K1p,C1)
                 preferred_element_type=jnp.float32)
    h1 = jnp.maximum(h1 + b1_ref[...], 0.0).astype(jnp.bfloat16)   # (M1, C1)

    # ---- conv2 + ReLU: sum over k*k taps; spatial gather is a 0/1 matmul --
    acc2 = jnp.zeros((n_sp2, c2), jnp.float32)
    for t in range(taps):                               # unrolled at trace time
        g = jnp.dot(sel_ref[t], h1,                     # (S2,M1)@(M1,C1)
                    preferred_element_type=jnp.float32)
        acc2 = acc2 + jnp.dot(g.astype(jnp.bfloat16), w2_ref[t],
                              preferred_element_type=jnp.float32)  # (S2,C2)
    h2 = jnp.maximum(acc2 + b2_ref[...], 0.0)                      # (S2, C2) f32

    # ---- flatten + Linear + ReLU (Dropout = identity, frozen/eval) --------
    # The NCHW flatten order is pre-folded into w3_ref[s] in the wrapper.
    acc3 = jnp.zeros((1, cp3), jnp.float32)
    for s in range(n_sp2):                              # unrolled at trace time
        acc3 = acc3 + jnp.dot(h2[s:s + 1, :].astype(jnp.bfloat16), w3_ref[s],
                              preferred_element_type=jnp.float32)  # (1, Cp3)
    o_ref[0] = jnp.maximum(acc3 + b3_ref[...], 0.0)


# ----------------------------------------------------------------------------
# PretrainedFrozen forward (Pallas path)
# ----------------------------------------------------------------------------
def pretrained_frozen_forward(x, params):
    w1, b1 = params["features"][0]["weight"], params["features"][0]["bias"]
    w2, b2 = params["features"][1]["weight"], params["features"][1]["bias"]
    w3, b3 = params["classifier"]["weight"], params["classifier"]["bias"]

    N, C, _, _ = x.shape
    # norm then crop in the original; norm is per-channel elementwise so we
    # crop first (free slicing) and normalize only the kept region.
    xc = x[:, :, 16:-16, 16:-16]
    Hc, Wc = xc.shape[2], xc.shape[3]

    # norm folded to a single per-channel affine, applied BEFORE conv1's zero
    # padding (exactly matches torch: `features` pads the normalized input).
    scale = (1.0 / (2.0 * _CLF_STD)).reshape(1, C, 1, 1)
    offset = ((1.0 - 2.0 * _CLF_MEAN) / (2.0 * _CLF_STD)).reshape(1, C, 1, 1)
    xn = (xc * scale + offset).astype(jnp.bfloat16)   # bf16 before im2col

    # static layer geometry
    C1, k1, st1, p1 = w1.shape[0], _F1["k"], _F1["stride"], _F1["pad"]
    C2, k2, st2, p2 = w2.shape[0], _F2["k"], _F2["stride"], _F2["pad"]
    Ho1 = (Hc + 2 * p1 - k1) // st1 + 1
    Wo1 = (Wc + 2 * p1 - k1) // st1 + 1
    Ho2 = (Ho1 + 2 * p2 - k2) // st2 + 1
    Wo2 = (Wo1 + 2 * p2 - k2) // st2 + 1
    M1, S2 = Ho1 * Wo1, Ho2 * Wo2
    h_size = w3.shape[0]

    # conv1 patches: (N, M1, K1p) bf16 — the only HBM-materialized intermediate
    a1, K1 = _im2col_nchw(xn, k1, st1, p1)
    K1p = _round_up(K1, 8)
    a1 = jnp.pad(a1, ((0, 0), (0, 0), (0, K1p - K1)))

    # conv1 weights as a (K1p, C1) matmul operand, (C, kh, kw) row order
    w1m = jnp.pad(w1.reshape(C1, K1).T,
                  ((0, K1p - K1), (0, 0))).astype(jnp.bfloat16)
    b1m = b1.reshape(1, C1).astype(jnp.float32)

    # conv2: per-tap weight stack (k*k, C1, C2) + 0/1 spatial selectors
    w2t = jnp.transpose(w2, (2, 3, 1, 0)).reshape(k2 * k2, C1, C2)
    w2t = w2t.astype(jnp.bfloat16)
    b2m = b2.reshape(1, C2).astype(jnp.float32)
    sel = _tap_selectors(Ho1, Wo1, Ho2, Wo2, k2, st2, p2)   # (k*k, S2, M1)

    # classifier: fold the torch NCHW flatten (feature index = c*S2 + s) into
    # a per-spatial-position weight stack (S2, C2, Cp3); pad output lane-dense.
    Cp3 = _round_up(h_size, 128)
    w3s = jnp.transpose(w3.reshape(h_size, C2, S2), (2, 1, 0))
    w3s = jnp.pad(w3s, ((0, 0), (0, 0), (0, Cp3 - h_size))).astype(jnp.bfloat16)
    b3m = jnp.pad(b3, (0, Cp3 - h_size)).reshape(1, Cp3).astype(jnp.float32)

    out = pl.pallas_call(
        _fused_forward_kernel,
        out_shape=jax.ShapeDtypeStruct((N, 1, Cp3), jnp.float32),
        grid=(N,),                       # one image per step: pipelined, and
        in_specs=[                       # 'parallel' uses both v7x TensorCores
            pl.BlockSpec((1, M1, K1p), lambda i: (i, 0, 0)),    # streamed A1
            pl.BlockSpec((K1p, C1), lambda i: (0, 0)),          # resident W1
            pl.BlockSpec((1, C1), lambda i: (0, 0)),
            pl.BlockSpec((k2 * k2, S2, M1), lambda i: (0, 0, 0)),  # selectors
            pl.BlockSpec((k2 * k2, C1, C2), lambda i: (0, 0, 0)),  # W2 taps
            pl.BlockSpec((1, C2), lambda i: (0, 0)),
            pl.BlockSpec((S2, C2, Cp3), lambda i: (0, 0, 0)),   # W3 stack
            pl.BlockSpec((1, Cp3), lambda i: (0, 0)),
        ],
        out_specs=pl.BlockSpec((1, 1, Cp3), lambda i: (i, 0, 0)),  # lane-dense
        compiler_params=pltpu.CompilerParams(
            dimension_semantics=("parallel",),
            vmem_limit_bytes=32 * 1024 * 1024,   # safe on v5e/v6e/v7x
        ),
    )(a1, w1m, b1m, sel, w2t, b2m, w3s, b3m)

    h = out[:, 0, :h_size]      # drop lane padding

    htrue = h
    hbin = h    # self.encode is an empty nn.Sequential -> identity
    hrec = h    # self.decode is an empty nn.Sequential -> identity
    return (htrue, hrec), hbin


# ----------------------------------------------------------------------------
# Parameters: small VGG-style stand-in for the injected `features`/`classifier`
# ----------------------------------------------------------------------------
def init_params(key, nc=3, h_size=32):
    k1, k2, k3, k4, k5, k6 = jax.random.split(key, 6)
    features = [
        dict(weight=0.05 * jax.random.normal(k1, (16, nc, 3, 3), jnp.float32),
             bias=0.05 * jax.random.normal(k2, (16,), jnp.float32)),
        dict(weight=0.05 * jax.random.normal(k3, (32, 16, 3, 3), jnp.float32),
             bias=0.05 * jax.random.normal(k4, (32,), jnp.float32)),
    ]
    feat_dim = 32 * 4 * 4  # 16x16 crop: 16 -> 8 -> 4 spatial
    classifier = dict(
        weight=0.05 * jax.random.normal(k5, (h_size, feat_dim), jnp.float32),
        bias=0.05 * jax.random.normal(k6, (h_size,), jnp.float32),
    )
    return dict(features=features, classifier=classifier)


# ----------------------------------------------------------------------------
# Pure-JAX reference (lax.conv) for numerical verification
# ----------------------------------------------------------------------------
def ref_forward(x, params):
    m = _CLF_MEAN.reshape(1, 3, 1, 1)
    s = _CLF_STD.reshape(1, 3, 1, 1)
    h = ((x + 1.0) / 2.0 - m) / s
    h = h[:, :, 16:-16, 16:-16]
    for layer, cfg in zip(params["features"], (_F1, _F2)):
        h = jax.lax.conv_general_dilated(
            h.astype(jnp.bfloat16), layer["weight"].astype(jnp.bfloat16),
            window_strides=(cfg["stride"], cfg["stride"]),
            padding=[(cfg["pad"], cfg["pad"])] * 2,
            dimension_numbers=("NCHW", "OIHW", "NCHW"),
            preferred_element_type=jnp.float32)
        h = jnp.maximum(h + layer["bias"].reshape(1, -1, 1, 1), 0.0)
    h = h.reshape(h.shape[0], -1)
    h = jnp.dot(h.astype(jnp.bfloat16),
                params["classifier"]["weight"].T.astype(jnp.bfloat16),
                preferred_element_type=jnp.float32)
    h = jnp.maximum(h + params["classifier"]["bias"], 0.0)
    return (h, h), h


if __name__ == "__main__":
    # The forward crops 16 pixels per side, so spatial must exceed 32; the
    # ImageNet mean/std imply 3 channels.  batch=2, spatial=48 -> 16x16 crop,
    # h_size=32.
    N, NC, HW, H_SIZE = 2, 3, 48, 32
    key = jax.random.PRNGKey(0)
    k_x, k_p = jax.random.split(key)
    x = jax.random.uniform(k_x, (N, NC, HW, HW), jnp.float32,
                           minval=-1.0, maxval=1.0)
    params = init_params(k_p, nc=NC, h_size=H_SIZE)

    fwd = jax.jit(pretrained_frozen_forward)
    (htrue, hrec), hbin = fwd(x, params)
    htrue = jax.block_until_ready(htrue)
    hrec = jax.block_until_ready(hrec)
    hbin = jax.block_until_ready(hbin)

    (rt, rr), rb = jax.jit(ref_forward)(x, params)
    rt = jax.block_until_ready(rt)

    assert htrue.shape == (N, H_SIZE), htrue.shape
    assert hrec.shape == (N, H_SIZE) and hbin.shape == (N, H_SIZE)
    assert jnp.allclose(htrue, rt, rtol=2e-2, atol=2e-2), (htrue, rt)
    assert jnp.allclose(hrec, rr, rtol=2e-2, atol=2e-2)
    assert jnp.allclose(hbin, rb, rtol=2e-2, atol=2e-2)

    print("KERNEL_OK")
</pallas_src>

<mosaic_0001>
module attributes {stable_mosaic.version = 11 : i64} {
  func.func @_fused_forward_kernel(%arg0: i32, %arg1: memref<1x64x32xbf16, #tpu.memory_space<vmem>>, %arg2: memref<32x16xbf16, #tpu.memory_space<vmem>>, %arg3: memref<1x16xf32, #tpu.memory_space<vmem>>, %arg4: memref<9x16x64xbf16, #tpu.memory_space<vmem>>, %arg5: memref<9x16x32xbf16, #tpu.memory_space<vmem>>, %arg6: memref<1x32xf32, #tpu.memory_space<vmem>>, %arg7: memref<16x32x128xbf16, #tpu.memory_space<vmem>>, %arg8: memref<1x128xf32, #tpu.memory_space<vmem>>, %arg9: memref<1x1x128xf32, #tpu.memory_space<vmem>>) attributes {dimension_semantics = [#tpu.dimension_semantics<parallel>], iteration_bounds = array<i64: 2>, scalar_prefetch = 0 : i64, scratch_operands = 0 : i64, tpu.core_type = #tpu.core_type<tc>, window_params = [{transform_indices = @transform_0, window_bounds = array<i64: 1, 64, 32>}, {pipeline_mode = #tpu.pipeline_mode<synchronous>, transform_indices = @transform_1, window_bounds = array<i64: 32, 16>}, {pipeline_mode = #tpu.pipeline_mode<synchronous>, transform_indices = @transform_2, window_bounds = array<i64: 1, 16>}, {pipeline_mode = #tpu.pipeline_mode<synchronous>, transform_indices = @transform_3, window_bounds = array<i64: 9, 16, 64>}, {pipeline_mode = #tpu.pipeline_mode<synchronous>, transform_indices = @transform_4, window_bounds = array<i64: 9, 16, 32>}, {pipeline_mode = #tpu.pipeline_mode<synchronous>, transform_indices = @transform_5, window_bounds = array<i64: 1, 32>}, {pipeline_mode = #tpu.pipeline_mode<synchronous>, transform_indices = @transform_6, window_bounds = array<i64: 16, 32, 128>}, {pipeline_mode = #tpu.pipeline_mode<synchronous>, transform_indices = @transform_7, window_bounds = array<i64: 1, 128>}, {transform_indices = @transform_8, window_bounds = array<i64: 1, 1, 128>}]} {
    %c0 = arith.constant 0 : index
    %c0_0 = arith.constant 0 : index
    %c0_1 = arith.constant 0 : index
    %0 = vector.load %arg1[%c0, %c0_0, %c0_1] : memref<1x64x32xbf16, #tpu.memory_space<vmem>>, vector<1x64x32xbf16>
    %1 = vector.shape_cast %0 : vector<1x64x32xbf16> to vector<64x32xbf16>
    %c0_2 = arith.constant 0 : index
    %c0_3 = arith.constant 0 : index
    %2 = vector.load %arg2[%c0_2, %c0_3] : memref<32x16xbf16, #tpu.memory_space<vmem>>, vector<32x16xbf16>
    %cst = arith.constant dense<0.000000e+00> : vector<64x16xf32>
    %3 = tpu.matmul %1, %2, %cst {dimension_numbers = #tpu.dot_dimension_numbers<[1], [0], [0], [1], [0, 0, 1, 1], [], []>} : vector<64x32xbf16>, vector<32x16xbf16>, vector<64x16xf32> -> vector<64x16xf32>
    %c0_4 = arith.constant 0 : index
    %c0_5 = arith.constant 0 : index
    %4 = vector.load %arg3[%c0_4, %c0_5] : memref<1x16xf32, #tpu.memory_space<vmem>>, vector<1x16xf32>
    %5 = vector.broadcast %4 : vector<1x16xf32> to vector<64x16xf32>
    %6 = arith.addf %3, %5 : vector<64x16xf32>
    %cst_6 = arith.constant 0.000000e+00 : f32
    %7 = vector.broadcast %cst_6 : f32 to vector<64x16xf32>
    %8 = arith.maximumf %6, %7 : vector<64x16xf32>
    %9 = arith.truncf %8 : vector<64x16xf32> to vector<64x16xbf16>
    %cst_7 = arith.constant 0.000000e+00 : f32
    %10 = vector.broadcast %cst_7 : f32 to vector<16x32xf32>
    %c0_8 = arith.constant 0 : index
    %c0_9 = arith.constant 0 : index
    %c0_10 = arith.constant 0 : index
    %11 = vector.load %arg4[%c0_8, %c0_9, %c0_10] : memref<9x16x64xbf16, #tpu.memory_space<vmem>>, vector<1x16x64xbf16>
    %12 = vector.shape_cast %11 : vector<1x16x64xbf16> to vector<16x64xbf16>
    %cst_11 = arith.constant dense<0.000000e+00> : vector<16x16xf32>
    %13 = tpu.matmul %12, %9, %cst_11 {dimension_numbers = #tpu.dot_dimension_numbers<[1], [0], [0], [1], [0, 0, 1, 1], [], []>} : vector<16x64xbf16>, vector<64x16xbf16>, vector<16x16xf32> -> vector<16x16xf32>
    %14 = arith.truncf %13 : vector<16x16xf32> to vector<16x16xbf16>
    %c0_12 = arith.constant 0 : index
    %c0_13 = arith.constant 0 : index
    %c0_14 = arith.constant 0 : index
    %15 = vector.load %arg5[%c0_12, %c0_13, %c0_14] : memref<9x16x32xbf16, #tpu.memory_space<vmem>>, vector<1x16x32xbf16>
    %16 = vector.shape_cast %15 : vector<1x16x32xbf16> to vector<16x32xbf16>
    %cst_15 = arith.constant dense<0.000000e+00> : vector<16x32xf32>
    %17 = tpu.matmul %14, %16, %cst_15 {dimension_numbers = #tpu.dot_dimension_numbers<[1], [0], [0], [1], [0, 0, 1, 1], [], []>} : vector<16x16xbf16>, vector<16x32xbf16>, vector<16x32xf32> -> vector<16x32xf32>
    %18 = arith.addf %10, %17 : vector<16x32xf32>
    %c1 = arith.constant 1 : index
    %c0_16 = arith.constant 0 : index
    %c0_17 = arith.constant 0 : index
    %19 = vector.load %arg4[%c1, %c0_16, %c0_17] : memref<9x16x64xbf16, #tpu.memory_space<vmem>>, vector<1x16x64xbf16>
    %20 = vector.shape_cast %19 : vector<1x16x64xbf16> to vector<16x64xbf16>
    %cst_18 = arith.constant dense<0.000000e+00> : vector<16x16xf32>
    %21 = tpu.matmul %20, %9, %cst_18 {dimension_numbers = #tpu.dot_dimension_numbers<[1], [0], [0], [1], [0, 0, 1, 1], [], []>} : vector<16x64xbf16>, vector<64x16xbf16>, vector<16x16xf32> -> vector<16x16xf32>
    %22 = arith.truncf %21 : vector<16x16xf32> to vector<16x16xbf16>
    %c1_19 = arith.constant 1 : index
    %c0_20 = arith.constant 0 : index
    %c0_21 = arith.constant 0 : index
    %23 = vector.load %arg5[%c1_19, %c0_20, %c0_21] : memref<9x16x32xbf16, #tpu.memory_space<vmem>>, vector<1x16x32xbf16>
    %24 = vector.shape_cast %23 : vector<1x16x32xbf16> to vector<16x32xbf16>
    %cst_22 = arith.constant dense<0.000000e+00> : vector<16x32xf32>
    %25 = tpu.matmul %22, %24, %cst_22 {dimension_numbers = #tpu.dot_dimension_numbers<[1], [0], [0], [1], [0, 0, 1, 1], [], []>} : vector<16x16xbf16>, vector<16x32xbf16>, vector<16x32xf32> -> vector<16x32xf32>
    %26 = arith.addf %18, %25 : vector<16x32xf32>
    %c2 = arith.constant 2 : index
    %c0_23 = arith.constant 0 : index
    %c0_24 = arith.constant 0 : index
    %27 = vector.load %arg4[%c2, %c0_23, %c0_24] : memref<9x16x64xbf16, #tpu.memory_space<vmem>>, vector<1x16x64xbf16>
    %28 = vector.shape_cast %27 : vector<1x16x64xbf16> to vector<16x64xbf16>
    %cst_25 = arith.constant dense<0.000000e+00> : vector<16x16xf32>
    %29 = tpu.matmul %28, %9, %cst_25 {dimension_numbers = #tpu.dot_dimension_numbers<[1], [0], [0], [1], [0, 0, 1, 1], [], []>} : vector<16x64xbf16>, vector<64x16xbf16>, vector<16x16xf32> -> vector<16x16xf32>
    %30 = arith.truncf %29 : vector<16x16xf32> to vector<16x16xbf16>
    %c2_26 = arith.constant 2 : index
    %c0_27 = arith.constant 0 : index
    %c0_28 = arith.constant 0 : index
    %31 = vector.load %arg5[%c2_26, %c0_27, %c0_28] : memref<9x16x32xbf16, #tpu.memory_space<vmem>>, vector<1x16x32xbf16>
    %32 = vector.shape_cast %31 : vector<1x16x32xbf16> to vector<16x32xbf16>
    %cst_29 = arith.constant dense<0.000000e+00> : vector<16x32xf32>
    %33 = tpu.matmul %30, %32, %cst_29 {dimension_numbers = #tpu.dot_dimension_numbers<[1], [0], [0], [1], [0, 0, 1, 1], [], []>} : vector<16x16xbf16>, vector<16x32xbf16>, vector<16x32xf32> -> vector<16x32xf32>
    %34 = arith.addf %26, %33 : vector<16x32xf32>
    %c3 = arith.constant 3 : index
    %c0_30 = arith.constant 0 : index
    %c0_31 = arith.constant 0 : index
    %35 = vector.load %arg4[%c3, %c0_30, %c0_31] : memref<9x16x64xbf16, #tpu.memory_space<vmem>>, vector<1x16x64xbf16>
    %36 = vector.shape_cast %35 : vector<1x16x64xbf16> to vector<16x64xbf16>
    %cst_32 = arith.constant dense<0.000000e+00> : vector<16x16xf32>
    %37 = tpu.matmul %36, %9, %cst_32 {dimension_numbers = #tpu.dot_dimension_numbers<[1], [0], [0], [1], [0, 0, 1, 1], [], []>} : vector<16x64xbf16>, vector<64x16xbf16>, vector<16x16xf32> -> vector<16x16xf32>
    %38 = arith.truncf %37 : vector<16x16xf32> to vector<16x16xbf16>
    %c3_33 = arith.constant 3 : index
    %c0_34 = arith.constant 0 : index
    %c0_35 = arith.constant 0 : index
    %39 = vector.load %arg5[%c3_33, %c0_34, %c0_35] : memref<9x16x32xbf16, #tpu.memory_space<vmem>>, vector<1x16x32xbf16>
    %40 = vector.shape_cast %39 : vector<1x16x32xbf16> to vector<16x32xbf16>
    %cst_36 = arith.constant dense<0.000000e+00> : vector<16x32xf32>
    %41 = tpu.matmul %38, %40, %cst_36 {dimension_numbers = #tpu.dot_dimension_numbers<[1], [0], [0], [1], [0, 0, 1, 1], [], []>} : vector<16x16xbf16>, vector<16x32xbf16>, vector<16x32xf32> -> vector<16x32xf32>
    %42 = arith.addf %34, %41 : vector<16x32xf32>
    %c4 = arith.constant 4 : index
    %c0_37 = arith.constant 0 : index
    %c0_38 = arith.constant 0 : index
    %43 = vector.load %arg4[%c4, %c0_37, %c0_38] : memref<9x16x64xbf16, #tpu.memory_space<vmem>>, vector<1x16x64xbf16>
    %44 = vector.shape_cast %43 : vector<1x16x64xbf16> to vector<16x64xbf16>
    %cst_39 = arith.constant dense<0.000000e+00> : vector<16x16xf32>
    %45 = tpu.matmul %44, %9, %cst_39 {dimension_numbers = #tpu.dot_dimension_numbers<[1], [0], [0], [1], [0, 0, 1, 1], [], []>} : vector<16x64xbf16>, vector<64x16xbf16>, vector<16x16xf32> -> vector<16x16xf32>
    %46 = arith.truncf %45 : vector<16x16xf32> to vector<16x16xbf16>
    %c4_40 = arith.constant 4 : index
    %c0_41 = arith.constant 0 : index
    %c0_42 = arith.constant 0 : index
    %47 = vector.load %arg5[%c4_40, %c0_41, %c0_42] : memref<9x16x32xbf16, #tpu.memory_space<vmem>>, vector<1x16x32xbf16>
    %48 = vector.shape_cast %47 : vector<1x16x32xbf16> to vector<16x32xbf16>
    %cst_43 = arith.constant dense<0.000000e+00> : vector<16x32xf32>
    %49 = tpu.matmul %46, %48, %cst_43 {dimension_numbers = #tpu.dot_dimension_numbers<[1], [0], [0], [1], [0, 0, 1, 1], [], []>} : vector<16x16xbf16>, vector<16x32xbf16>, vector<16x32xf32> -> vector<16x32xf32>
    %50 = arith.addf %42, %49 : vector<16x32xf32>
    %c5 = arith.constant 5 : index
    %c0_44 = arith.constant 0 : index
    %c0_45 = arith.constant 0 : index
    %51 = vector.load %arg4[%c5, %c0_44, %c0_45] : memref<9x16x64xbf16, #tpu.memory_space<vmem>>, vector<1x16x64xbf16>
    %52 = vector.shape_cast %51 : vector<1x16x64xbf16> to vector<16x64xbf16>
    %cst_46 = arith.constant dense<0.000000e+00> : vector<16x16xf32>
    %53 = tpu.matmul %52, %9, %cst_46 {dimension_numbers = #tpu.dot_dimension_numbers<[1], [0], [0], [1], [0, 0, 1, 1], [], []>} : vector<16x64xbf16>, vector<64x16xbf16>, vector<16x16xf32> -> vector<16x16xf32>
    %54 = arith.truncf %53 : vector<16x16xf32> to vector<16x16xbf16>
    %c5_47 = arith.constant 5 : index
    %c0_48 = arith.constant 0 : index
    %c0_49 = arith.constant 0 : index
    %55 = vector.load %arg5[%c5_47, %c0_48, %c0_49] : memref<9x16x32xbf16, #tpu.memory_space<vmem>>, vector<1x16x32xbf16>
    %56 = vector.shape_cast %55 : vector<1x16x32xbf16> to vector<16x32xbf16>
    %cst_50 = arith.constant dense<0.000000e+00> : vector<16x32xf32>
    %57 = tpu.matmul %54, %56, %cst_50 {dimension_numbers = #tpu.dot_dimension_numbers<[1], [0], [0], [1], [0, 0, 1, 1], [], []>} : vector<16x16xbf16>, vector<16x32xbf16>, vector<16x32xf32> -> vector<16x32xf32>
    %58 = arith.addf %50, %57 : vector<16x32xf32>
    %c6 = arith.constant 6 : index
    %c0_51 = arith.constant 0 : index
    %c0_52 = arith.constant 0 : index
    %59 = vector.load %arg4[%c6, %c0_51, %c0_52] : memref<9x16x64xbf16, #tpu.memory_space<vmem>>, vector<1x16x64xbf16>
    %60 = vector.shape_cast %59 : vector<1x16x64xbf16> to vector<16x64xbf16>
    %cst_53 = arith.constant dense<0.000000e+00> : vector<16x16xf32>
    %61 = tpu.matmul %60, %9, %cst_53 {dimension_numbers = #tpu.dot_dimension_numbers<[1], [0], [0], [1], [0, 0, 1, 1], [], []>} : vector<16x64xbf16>, vector<64x16xbf16>, vector<16x16xf32> -> vector<16x16xf32>
    %62 = arith.truncf %61 : vector<16x16xf32> to vector<16x16xbf16>
    %c6_54 = arith.constant 6 : index
    %c0_55 = arith.constant 0 : index
    %c0_56 = arith.constant 0 : index
    %63 = vector.load %arg5[%c6_54, %c0_55, %c0_56] : memref<9x16x32xbf16, #tpu.memory_space<vmem>>, vector<1x16x32xbf16>
    %64 = vector.shape_cast %63 : vector<1x16x32xbf16> to vector<16x32xbf16>
    %cst_57 = arith.constant dense<0.000000e+00> : vector<16x32xf32>
    %65 = tpu.matmul %62, %64, %cst_57 {dimension_numbers = #tpu.dot_dimension_numbers<[1], [0], [0], [1], [0, 0, 1, 1], [], []>} : vector<16x16xbf16>, vector<16x32xbf16>, vector<16x32xf32> -> vector<16x32xf32>
    %66 = arith.addf %58, %65 : vector<16x32xf32>
    %c7 = arith.constant 7 : index
    %c0_58 = arith.constant 0 : index
    %c0_59 = arith.constant 0 : index
    %67 = vector.load %arg4[%c7, %c0_58, %c0_59] : memref<9x16x64xbf16, #tpu.memory_space<vmem>>, vector<1x16x64xbf16>
    %68 = vector.shape_cast %67 : vector<1x16x64xbf16> to vector<16x64xbf16>
    %cst_60 = arith.constant dense<0.000000e+00> : vector<16x16xf32>
    %69 = tpu.matmul %68, %9, %cst_60 {dimension_numbers = #tpu.dot_dimension_numbers<[1], [0], [0], [1], [0, 0, 1, 1], [], []>} : vector<16x64xbf16>, vector<64x16xbf16>, vector<16x16xf32> -> vector<16x16xf32>
    %70 = arith.truncf %69 : vector<16x16xf32> to vector<16x16xbf16>
    %c7_61 = arith.constant 7 : index
    %c0_62 = arith.constant 0 : index
    %c0_63 = arith.constant 0 : index
    %71 = vector.load %arg5[%c7_61, %c0_62, %c0_63] : memref<9x16x32xbf16, #tpu.memory_space<vmem>>, vector<1x16x32xbf16>
    %72 = vector.shape_cast %71 : vector<1x16x32xbf16> to vector<16x32xbf16>
    %cst_64 = arith.constant dense<0.000000e+00> : vector<16x32xf32>
    %73 = tpu.matmul %70, %72, %cst_64 {dimension_numbers = #tpu.dot_dimension_numbers<[1], [0], [0], [1], [0, 0, 1, 1], [], []>} : vector<16x16xbf16>, vector<16x32xbf16>, vector<16x32xf32> -> vector<16x32xf32>
    %74 = arith.addf %66, %73 : vector<16x32xf32>
    %c8 = arith.constant 8 : index
    %c0_65 = arith.constant 0 : index
    %c0_66 = arith.constant 0 : index
    %75 = vector.load %arg4[%c8, %c0_65, %c0_66] : memref<9x16x64xbf16, #tpu.memory_space<vmem>>, vector<1x16x64xbf16>
    %76 = vector.shape_cast %75 : vector<1x16x64xbf16> to vector<16x64xbf16>
    %cst_67 = arith.constant dense<0.000000e+00> : vector<16x16xf32>
    %77 = tpu.matmul %76, %9, %cst_67 {dimension_numbers = #tpu.dot_dimension_numbers<[1], [0], [0], [1], [0, 0, 1, 1], [], []>} : vector<16x64xbf16>, vector<64x16xbf16>, vector<16x16xf32> -> vector<16x16xf32>
    %78 = arith.truncf %77 : vector<16x16xf32> to vector<16x16xbf16>
    %c8_68 = arith.constant 8 : index
    %c0_69 = arith.constant 0 : index
    %c0_70 = arith.constant 0 : index
    %79 = vector.load %arg5[%c8_68, %c0_69, %c0_70] : memref<9x16x32xbf16, #tpu.memory_space<vmem>>, vector<1x16x32xbf16>
    %80 = vector.shape_cast %79 : vector<1x16x32xbf16> to vector<16x32xbf16>
    %cst_71 = arith.constant dense<0.000000e+00> : vector<16x32xf32>
    %81 = tpu.matmul %78, %80, %cst_71 {dimension_numbers = #tpu.dot_dimension_numbers<[1], [0], [0], [1], [0, 0, 1, 1], [], []>} : vector<16x16xbf16>, vector<16x32xbf16>, vector<16x32xf32> -> vector<16x32xf32>
    %82 = arith.addf %74, %81 : vector<16x32xf32>
    %c0_72 = arith.constant 0 : index
    %c0_73 = arith.constant 0 : index
    %83 = vector.load %arg6[%c0_72, %c0_73] : memref<1x32xf32, #tpu.memory_space<vmem>>, vector<1x32xf32>
    %84 = vector.broadcast %83 : vector<1x32xf32> to vector<16x32xf32>
    %85 = arith.addf %82, %84 : vector<16x32xf32>
    %cst_74 = arith.constant 0.000000e+00 : f32
    %86 = vector.broadcast %cst_74 : f32 to vector<16x32xf32>
    %87 = arith.maximumf %85, %86 : vector<16x32xf32>
    %cst_75 = arith.constant 0.000000e+00 : f32
    %88 = vector.broadcast %cst_75 : f32 to vector<1x128xf32>
    %89 = vector.extract_strided_slice %87 {offsets = [0, 0], sizes = [1, 32], strides = [1, 1]} : vector<16x32xf32> to vector<1x32xf32>
    %90 = arith.truncf %89 : vector<1x32xf32> to vector<1x32xbf16>
    %c0_76 = arith.constant 0 : index
    %c0_77 = arith.constant 0 : index
    %c0_78 = arith.constant 0 : index
    %91 = vector.load %arg7[%c0_76, %c0_77, %c0_78] : memref<16x32x128xbf16, #tpu.memory_space<vmem>>, vector<1x32x128xbf16>
    %92 = vector.shape_cast %91 : vector<1x32x128xbf16> to vector<32x128xbf16>
    %cst_79 = arith.constant dense<0.000000e+00> : vector<1x128xf32>
    %93 = tpu.matmul %90, %92, %cst_79 {dimension_numbers = #tpu.dot_dimension_numbers<[1], [0], [0], [1], [0, 0, 1, 1], [], []>} : vector<1x32xbf16>, vector<32x128xbf16>, vector<1x128xf32> -> vector<1x128xf32>
    %94 = arith.addf %88, %93 : vector<1x128xf32>
    %95 = vector.extract_strided_slice %87 {offsets = [1, 0], sizes = [1, 32], strides = [1, 1]} : vector<16x32xf32> to vector<1x32xf32>
    %96 = arith.truncf %95 : vector<1x32xf32> to vector<1x32xbf16>
    %c1_80 = arith.constant 1 : index
    %c0_81 = arith.constant 0 : index
    %c0_82 = arith.constant 0 : index
    %97 = vector.load %arg7[%c1_80, %c0_81, %c0_82] : memref<16x32x128xbf16, #tpu.memory_space<vmem>>, vector<1x32x128xbf16>
    %98 = vector.shape_cast %97 : vector<1x32x128xbf16> to vector<32x128xbf16>
    %cst_83 = arith.constant dense<0.000000e+00> : vector<1x128xf32>
    %99 = tpu.matmul %96, %98, %cst_83 {dimension_numbers = #tpu.dot_dimension_numbers<[1], [0], [0], [1], [0, 0, 1, 1], [], []>} : vector<1x32xbf16>, vector<32x128xbf16>, vector<1x128xf32> -> vector<1x128xf32>
    %100 = arith.addf %94, %99 : vector<1x128xf32>
    %101 = vector.extract_strided_slice %87 {offsets = [2, 0], sizes = [1, 32], strides = [1, 1]} : vector<16x32xf32> to vector<1x32xf32>
    %102 = arith.truncf %101 : vector<1x32xf32> to vector<1x32xbf16>
    %c2_84 = arith.constant 2 : index
    %c0_85 = arith.constant 0 : index
    %c0_86 = arith.constant 0 : index
    %103 = vector.load %arg7[%c2_84, %c0_85, %c0_86] : memref<16x32x128xbf16, #tpu.memory_space<vmem>>, vector<1x32x128xbf16>
    %104 = vector.shape_cast %103 : vector<1x32x128xbf16> to vector<32x128xbf16>
    %cst_87 = arith.constant dense<0.000000e+00> : vector<1x128xf32>
    %105 = tpu.matmul %102, %104, %cst_87 {dimension_numbers = #tpu.dot_dimension_numbers<[1], [0], [0], [1], [0, 0, 1, 1], [], []>} : vector<1x32xbf16>, vector<32x128xbf16>, vector<1x128xf32> -> vector<1x128xf32>
    %106 = arith.addf %100, %105 : vector<1x128xf32>
    %107 = vector.extract_strided_slice %87 {offsets = [3, 0], sizes = [1, 32], strides = [1, 1]} : vector<16x32xf32> to vector<1x32xf32>
    %108 = arith.truncf %107 : vector<1x32xf32> to vector<1x32xbf16>
    %c3_88 = arith.constant 3 : index
    %c0_89 = arith.constant 0 : index
    %c0_90 = arith.constant 0 : index
    %109 = vector.load %arg7[%c3_88, %c0_89, %c0_90] : memref<16x32x128xbf16, #tpu.memory_space<vmem>>, vector<1x32x128xbf16>
    %110 = vector.shape_cast %109 : vector<1x32x128xbf16> to vector<32x128xbf16>
    %cst_91 = arith.constant dense<0.000000e+00> : vector<1x128xf32>
    %111 = tpu.matmul %108, %110, %cst_91 {dimension_numbers = #tpu.dot_dimension_numbers<[1], [0], [0], [1], [0, 0, 1, 1], [], []>} : vector<1x32xbf16>, vector<32x128xbf16>, vector<1x128xf32> -> vector<1x128xf32>
    %112 = arith.addf %106, %111 : vector<1x128xf32>
    %113 = vector.extract_strided_slice %87 {offsets = [4, 0], sizes = [1, 32], strides = [1, 1]} : vector<16x32xf32> to vector<1x32xf32>
    %114 = arith.truncf %113 : vector<1x32xf32> to vector<1x32xbf16>
    %c4_92 = arith.constant 4 : index
    %c0_93 = arith.constant 0 : index
    %c0_94 = arith.constant 0 : index
    %115 = vector.load %arg7[%c4_92, %c0_93, %c0_94] : memref<16x32x128xbf16, #tpu.memory_space<vmem>>, vector<1x32x128xbf16>
    %116 = vector.shape_cast %115 : vector<1x32x128xbf16> to vector<32x128xbf16>
    %cst_95 = arith.constant dense<0.000000e+00> : vector<1x128xf32>
    %117 = tpu.matmul %114, %116, %cst_95 {dimension_numbers = #tpu.dot_dimension_numbers<[1], [0], [0], [1], [0, 0, 1, 1], [], []>} : vector<1x32xbf16>, vector<32x128xbf16>, vector<1x128xf32> -> vector<1x128xf32>
    %118 = arith.addf %112, %117 : vector<1x128xf32>
    %119 = vector.extract_strided_slice %87 {offsets = [5, 0], sizes = [1, 32], strides = [1, 1]} : vector<16x32xf32> to vector<1x32xf32>
    %120 = arith.truncf %119 : vector<1x32xf32> to vector<1x32xbf16>
    %c5_96 = arith.constant 5 : index
    %c0_97 = arith.constant 0 : index
    %c0_98 = arith.constant 0 : index
    %121 = vector.load %arg7[%c5_96, %c0_97, %c0_98] : memref<16x32x128xbf16, #tpu.memory_space<vmem>>, vector<1x32x128xbf16>
    %122 = vector.shape_cast %121 : vector<1x32x128xbf16> to vector<32x128xbf16>
    %cst_99 = arith.constant dense<0.000000e+00> : vector<1x128xf32>
    %123 = tpu.matmul %120, %122, %cst_99 {dimension_numbers = #tpu.dot_dimension_numbers<[1], [0], [0], [1], [0, 0, 1, 1], [], []>} : vector<1x32xbf16>, vector<32x128xbf16>, vector<1x128xf32> -> vector<1x128xf32>
    %124 = arith.addf %118, %123 : vector<1x128xf32>
    %125 = vector.extract_strided_slice %87 {offsets = [6, 0], sizes = [1, 32], strides = [1, 1]} : vector<16x32xf32> to vector<1x32xf32>
    %126 = arith.truncf %125 : vector<1x32xf32> to vector<1x32xbf16>
    %c6_100 = arith.constant 6 : index
    %c0_101 = arith.constant 0 : index
    %c0_102 = arith.constant 0 : index
    %127 = vector.load %arg7[%c6_100, %c0_101, %c0_102] : memref<16x32x128xbf16, #tpu.memory_space<vmem>>, vector<1x32x128xbf16>
    %128 = vector.shape_cast %127 : vector<1x32x128xbf16> to vector<32x128xbf16>
    %cst_103 = arith.constant dense<0.000000e+00> : vector<1x128xf32>
    %129 = tpu.matmul %126, %128, %cst_103 {dimension_numbers = #tpu.dot_dimension_numbers<[1], [0], [0], [1], [0, 0, 1, 1], [], []>} : vector<1x32xbf16>, vector<32x128xbf16>, vector<1x128xf32> -> vector<1x128xf32>
    %130 = arith.addf %124, %129 : vector<1x128xf32>
    %131 = vector.extract_strided_slice %87 {offsets = [7, 0], sizes = [1, 32], strides = [1, 1]} : vector<16x32xf32> to vector<1x32xf32>
    %132 = arith.truncf %131 : vector<1x32xf32> to vector<1x32xbf16>
    %c7_104 = arith.constant 7 : index
    %c0_105 = arith.constant 0 : index
    %c0_106 = arith.constant 0 : index
    %133 = vector.load %arg7[%c7_104, %c0_105, %c0_106] : memref<16x32x128xbf16, #tpu.memory_space<vmem>>, vector<1x32x128xbf16>
    %134 = vector.shape_cast %133 : vector<1x32x128xbf16> to vector<32x128xbf16>
    %cst_107 = arith.constant dense<0.000000e+00> : vector<1x128xf32>
    %135 = tpu.matmul %132, %134, %cst_107 {dimension_numbers = #tpu.dot_dimension_numbers<[1], [0], [0], [1], [0, 0, 1, 1], [], []>} : vector<1x32xbf16>, vector<32x128xbf16>, vector<1x128xf32> -> vector<1x128xf32>
    %136 = arith.addf %130, %135 : vector<1x128xf32>
    %137 = vector.extract_strided_slice %87 {offsets = [8, 0], sizes = [1, 32], strides = [1, 1]} : vector<16x32xf32> to vector<1x32xf32>
    %138 = arith.truncf %137 : vector<1x32xf32> to vector<1x32xbf16>
    %c8_108 = arith.constant 8 : index
    %c0_109 = arith.constant 0 : index
    %c0_110 = arith.constant 0 : index
    %139 = vector.load %arg7[%c8_108, %c0_109, %c0_110] : memref<16x32x128xbf16, #tpu.memory_space<vmem>>, vector<1x32x128xbf16>
    %140 = vector.shape_cast %139 : vector<1x32x128xbf16> to vector<32x128xbf16>
    %cst_111 = arith.constant dense<0.000000e+00> : vector<1x128xf32>
    %141 = tpu.matmul %138, %140, %cst_111 {dimension_numbers = #tpu.dot_dimension_numbers<[1], [0], [0], [1], [0, 0, 1, 1], [], []>} : vector<1x32xbf16>, vector<32x128xbf16>, vector<1x128xf32> -> vector<1x128xf32>
    %142 = arith.addf %136, %141 : vector<1x128xf32>
    %143 = vector.extract_strided_slice %87 {offsets = [9, 0], sizes = [1, 32], strides = [1, 1]} : vector<16x32xf32> to vector<1x32xf32>
    %144 = arith.truncf %143 : vector<1x32xf32> to vector<1x32xbf16>
    %c9 = arith.constant 9 : index
    %c0_112 = arith.constant 0 : index
    %c0_113 = arith.constant 0 : index
    %145 = vector.load %arg7[%c9, %c0_112, %c0_113] : memref<16x32x128xbf16, #tpu.memory_space<vmem>>, vector<1x32x128xbf16>
    %146 = vector.shape_cast %145 : vector<1x32x128xbf16> to vector<32x128xbf16>
    %cst_114 = arith.constant dense<0.000000e+00> : vector<1x128xf32>
    %147 = tpu.matmul %144, %146, %cst_114 {dimension_numbers = #tpu.dot_dimension_numbers<[1], [0], [0], [1], [0, 0, 1, 1], [], []>} : vector<1x32xbf16>, vector<32x128xbf16>, vector<1x128xf32> -> vector<1x128xf32>
    %148 = arith.addf %142, %147 : vector<1x128xf32>
    %149 = vector.extract_strided_slice %87 {offsets = [10, 0], sizes = [1, 32], strides = [1, 1]} : vector<16x32xf32> to vector<1x32xf32>
    %150 = arith.truncf %149 : vector<1x32xf32> to vector<1x32xbf16>
    %c10 = arith.constant 10 : index
    %c0_115 = arith.constant 0 : index
    %c0_116 = arith.constant 0 : index
    %151 = vector.load %arg7[%c10, %c0_115, %c0_116] : memref<16x32x128xbf16, #tpu.memory_space<vmem>>, vector<1x32x128xbf16>
    %152 = vector.shape_cast %151 : vector<1x32x128xbf16> to vector<32x128xbf16>
    %cst_117 = arith.constant dense<0.000000e+00> : vector<1x128xf32>
    %153 = tpu.matmul %150, %152, %cst_117 {dimension_numbers = #tpu.dot_dimension_numbers<[1], [0], [0], [1], [0, 0, 1, 1], [], []>} : vector<1x32xbf16>, vector<32x128xbf16>, vector<1x128xf32> -> vector<1x128xf32>
    %154 = arith.addf %148, %153 : vector<1x128xf32>
    %155 = vector.extract_strided_slice %87 {offsets = [11, 0], sizes = [1, 32], strides = [1, 1]} : vector<16x32xf32> to vector<1x32xf32>
    %156 = arith.truncf %155 : vector<1x32xf32> to vector<1x32xbf16>
    %c11 = arith.constant 11 : index
    %c0_118 = arith.constant 0 : index
    %c0_119 = arith.constant 0 : index
    %157 = vector.load %arg7[%c11, %c0_118, %c0_119] : memref<16x32x128xbf16, #tpu.memory_space<vmem>>, vector<1x32x128xbf16>
    %158 = vector.shape_cast %157 : vector<1x32x128xbf16> to vector<32x128xbf16>
    %cst_120 = arith.constant dense<0.000000e+00> : vector<1x128xf32>
    %159 = tpu.matmul %156, %158, %cst_120 {dimension_numbers = #tpu.dot_dimension_numbers<[1], [0], [0], [1], [0, 0, 1, 1], [], []>} : vector<1x32xbf16>, vector<32x128xbf16>, vector<1x128xf32> -> vector<1x128xf32>
    %160 = arith.addf %154, %159 : vector<1x128xf32>
    %161 = vector.extract_strided_slice %87 {offsets = [12, 0], sizes = [1, 32], strides = [1, 1]} : vector<16x32xf32> to vector<1x32xf32>
    %162 = arith.truncf %161 : vector<1x32xf32> to vector<1x32xbf16>
    %c12 = arith.constant 12 : index
    %c0_121 = arith.constant 0 : index
    %c0_122 = arith.constant 0 : index
    %163 = vector.load %arg7[%c12, %c0_121, %c0_122] : memref<16x32x128xbf16, #tpu.memory_space<vmem>>, vector<1x32x128xbf16>
    %164 = vector.shape_cast %163 : vector<1x32x128xbf16> to vector<32x128xbf16>
    %cst_123 = arith.constant dense<0.000000e+00> : vector<1x128xf32>
    %165 = tpu.matmul %162, %164, %cst_123 {dimension_numbers = #tpu.dot_dimension_numbers<[1], [0], [0], [1], [0, 0, 1, 1], [], []>} : vector<1x32xbf16>, vector<32x128xbf16>, vector<1x128xf32> -> vector<1x128xf32>
    %166 = arith.addf %160, %165 : vector<1x128xf32>
    %167 = vector.extract_strided_slice %87 {offsets = [13, 0], sizes = [1, 32], strides = [1, 1]} : vector<16x32xf32> to vector<1x32xf32>
    %168 = arith.truncf %167 : vector<1x32xf32> to vector<1x32xbf16>
    %c13 = arith.constant 13 : index
    %c0_124 = arith.constant 0 : index
    %c0_125 = arith.constant 0 : index
    %169 = vector.load %arg7[%c13, %c0_124, %c0_125] : memref<16x32x128xbf16, #tpu.memory_space<vmem>>, vector<1x32x128xbf16>
    %170 = vector.shape_cast %169 : vector<1x32x128xbf16> to vector<32x128xbf16>
    %cst_126 = arith.constant dense<0.000000e+00> : vector<1x128xf32>
    %171 = tpu.matmul %168, %170, %cst_126 {dimension_numbers = #tpu.dot_dimension_numbers<[1], [0], [0], [1], [0, 0, 1, 1], [], []>} : vector<1x32xbf16>, vector<32x128xbf16>, vector<1x128xf32> -> vector<1x128xf32>
    %172 = arith.addf %166, %171 : vector<1x128xf32>
    %173 = vector.extract_strided_slice %87 {offsets = [14, 0], sizes = [1, 32], strides = [1, 1]} : vector<16x32xf32> to vector<1x32xf32>
    %174 = arith.truncf %173 : vector<1x32xf32> to vector<1x32xbf16>
    %c14 = arith.constant 14 : index
    %c0_127 = arith.constant 0 : index
    %c0_128 = arith.constant 0 : index
    %175 = vector.load %arg7[%c14, %c0_127, %c0_128] : memref<16x32x128xbf16, #tpu.memory_space<vmem>>, vector<1x32x128xbf16>
    %176 = vector.shape_cast %175 : vector<1x32x128xbf16> to vector<32x128xbf16>
    %cst_129 = arith.constant dense<0.000000e+00> : vector<1x128xf32>
    %177 = tpu.matmul %174, %176, %cst_129 {dimension_numbers = #tpu.dot_dimension_numbers<[1], [0], [0], [1], [0, 0, 1, 1], [], []>} : vector<1x32xbf16>, vector<32x128xbf16>, vector<1x128xf32> -> vector<1x128xf32>
    %178 = arith.addf %172, %177 : vector<1x128xf32>
    %179 = vector.extract_strided_slice %87 {offsets = [15, 0], sizes = [1, 32], strides = [1, 1]} : vector<16x32xf32> to vector<1x32xf32>
    %180 = arith.truncf %179 : vector<1x32xf32> to vector<1x32xbf16>
    %c15 = arith.constant 15 : index
    %c0_130 = arith.constant 0 : index
    %c0_131 = arith.constant 0 : index
    %181 = vector.load %arg7[%c15, %c0_130, %c0_131] : memref<16x32x128xbf16, #tpu.memory_space<vmem>>, vector<1x32x128xbf16>
    %182 = vector.shape_cast %181 : vector<1x32x128xbf16> to vector<32x128xbf16>
    %cst_132 = arith.constant dense<0.000000e+00> : vector<1x128xf32>
    %183 = tpu.matmul %180, %182, %cst_132 {dimension_numbers = #tpu.dot_dimension_numbers<[1], [0], [0], [1], [0, 0, 1, 1], [], []>} : vector<1x32xbf16>, vector<32x128xbf16>, vector<1x128xf32> -> vector<1x128xf32>
    %184 = arith.addf %178, %183 : vector<1x128xf32>
    %c0_133 = arith.constant 0 : index
    %c0_134 = arith.constant 0 : index
    %185 = vector.load %arg8[%c0_133, %c0_134] : memref<1x128xf32, #tpu.memory_space<vmem>>, vector<1x128xf32>
    %186 = arith.addf %184, %185 : vector<1x128xf32>
    %cst_135 = arith.constant 0.000000e+00 : f32
    %187 = vector.broadcast %cst_135 : f32 to vector<1x128xf32>
    %188 = arith.maximumf %186, %187 : vector<1x128xf32>
    %c0_136 = arith.constant 0 : index
    %c0_137 = arith.constant 0 : index
    %c0_138 = arith.constant 0 : index
    %189 = vector.load %arg9[%c0_136, %c0_137, %c0_138] : memref<1x1x128xf32, #tpu.memory_space<vmem>>, vector<1x1x128xf32>
    %190 = vector.shape_cast %189 : vector<1x1x128xf32> to vector<1x128xf32>
    %191 = vector.shape_cast %188 : vector<1x128xf32> to vector<1x1x128xf32>
    tpu.vector_store %arg9[%c0_136, %c0_137, %c0_138], %191 {strides = array<i32>} : memref<1x1x128xf32, #tpu.memory_space<vmem>>, vector<1x1x128xf32>,
    return
  }
  func.func @transform_0(%arg0: i32) -> (i32, i32, i32) {
    %c0_i32 = arith.constant 0 : i32
    %c0_i32_0 = arith.constant 0 : i32
    %c0_i32_1 = arith.constant 0 : i32
    return %arg0, %c0_i32, %c0_i32_0 : i32, i32, i32
  }
  func.func @transform_1(%arg0: i32) -> (i32, i32) {
    %c0_i32 = arith.constant 0 : i32
    %c0_i32_0 = arith.constant 0 : i32
    %c0_i32_1 = arith.constant 0 : i32
    return %c0_i32, %c0_i32_0 : i32, i32
  }
  func.func @transform_2(%arg0: i32) -> (i32, i32) {
    %c0_i32 = arith.constant 0 : i32
    %c0_i32_0 = arith.constant 0 : i32
    %c0_i32_1 = arith.constant 0 : i32
    return %c0_i32, %c0_i32_0 : i32, i32
  }
  func.func @transform_3(%arg0: i32) -> (i32, i32, i32) {
    %c0_i32 = arith.constant 0 : i32
    %c0_i32_0 = arith.constant 0 : i32
    %c0_i32_1 = arith.constant 0 : i32
    %c0_i32_2 = arith.constant 0 : i32
    return %c0_i32, %c0_i32_0, %c0_i32_1 : i32, i32, i32
  }
  func.func @transform_4(%arg0: i32) -> (i32, i32, i32) {
    %c0_i32 = arith.constant 0 : i32
    %c0_i32_0 = arith.constant 0 : i32
    %c0_i32_1 = arith.constant 0 : i32
    %c0_i32_2 = arith.constant 0 : i32
    return %c0_i32, %c0_i32_0, %c0_i32_1 : i32, i32, i32
  }
  func.func @transform_5(%arg0: i32) -> (i32, i32) {
    %c0_i32 = arith.constant 0 : i32
    %c0_i32_0 = arith.constant 0 : i32
    %c0_i32_1 = arith.constant 0 : i32
    return %c0_i32, %c0_i32_0 : i32, i32
  }
  func.func @transform_6(%arg0: i32) -> (i32, i32, i32) {
    %c0_i32 = arith.constant 0 : i32
    %c0_i32_0 = arith.constant 0 : i32
    %c0_i32_1 = arith.constant 0 : i32
    %c0_i32_2 = arith.constant 0 : i32
    return %c0_i32, %c0_i32_0, %c0_i32_1 : i32, i32, i32
  }
  func.func @transform_7(%arg0: i32) -> (i32, i32) {
    %c0_i32 = arith.constant 0 : i32
    %c0_i32_0 = arith.constant 0 : i32
    %c0_i32_1 = arith.constant 0 : i32
    return %c0_i32, %c0_i32_0 : i32, i32
  }
  func.func @transform_8(%arg0: i32) -> (i32, i32, i32) {
    %c0_i32 = arith.constant 0 : i32
    %c0_i32_0 = arith.constant 0 : i32
    %c0_i32_1 = arith.constant 0 : i32
    return %arg0, %c0_i32, %c0_i32_0 : i32, i32, i32
  }
}

</mosaic_0001>

<llo_original>
// kernel: pretrained_frozen_forward.1
$region0: #{pretrained_frozen_forward.1}
  #allocation0 [shape = 'u32[]', space=smem, size = 0x4, offset = 0x4, fixed_abs, tag = 'smem constant byte address 0x4 - core index']
  #allocation1 [shape = 'u32[144,128]{1,0:T(1,128)}', space=vmem, size = 0x12000, scoped, tag = 'internal scratch']
  %s0 = inlined_call_operand.vmem [shape: bf16[2,64,32], index: 0, kind: input, shape index: {}]
  %s1 = inlined_call_operand.vmem [shape: bf16[32,16], index: 1, kind: input, shape index: {}]
  %s2 = inlined_call_operand.vmem [shape: f32[1,16], index: 2, kind: input, shape index: {}]
  %s3 = inlined_call_operand.vmem [shape: bf16[9,16,64], index: 3, kind: input, shape index: {}]
  %s4 = inlined_call_operand.vmem [shape: bf16[9,16,32], index: 4, kind: input, shape index: {}]
  %s5 = inlined_call_operand.vmem [shape: f32[1,32], index: 5, kind: input, shape index: {}]
  %s6 = inlined_call_operand.vmem [shape: bf16[16,32,128], index: 6, kind: input, shape index: {}]
  %s7 = inlined_call_operand.vmem [shape: f32[1,128], index: 7, kind: input, shape index: {}]
  %s8 = inlined_call_operand.vmem [shape: f32[2,1,128], index: 8, kind: output, shape index: {}]
  %s9 = sld [smem:[#allocation0]]
  $region65: #{pretrained_frozen_forward.1} parent=0
    _
  %s11 = ssub.s32 1, %s9
  %s12 = scalar_select 0, %s11, %s9
  loop: start=0, step=1, limit=4
  $region2: #{pretrained_frozen_forward.1} parent=0 // loop_pre_header
    _
  $region3: #{pretrained_frozen_forward.1} parent=0 // loop_header
    %s14 = sphi 0, %s18
    %p15 = scmp.ge.s32.totalorder %s14, 4
    %s24 = sphi 0, %s26
    %s27 = sphi 0, %s24
    %s28 = sphi 0, %s27
    %s44 = sphi 0, %s28
    %s48 = sphi 0, %s48
    %s50 = sphi 0, %s48
    %s51 = sphi 0, %s50
    %s65 = sphi 0, %s51
    %s69 = sphi 0, %s69
    %s71 = sphi 0, %s69
    %s72 = sphi 0, %s71
    %s86 = sphi 0, %s72
    %s90 = sphi 0, %s90
    %s92 = sphi 0, %s90
    %s93 = sphi 0, %s92
    %s107 = sphi 0, %s93
    %s111 = sphi 0, %s111
    %s113 = sphi 0, %s111
    %s114 = sphi 0, %s113
    %s128 = sphi 0, %s114
    %s132 = sphi 0, %s132
    %s134 = sphi 0, %s132
    %s135 = sphi 0, %s134
    %s149 = sphi 0, %s135
    %s153 = sphi 0, %s153
    %s155 = sphi 0, %s153
    %s156 = sphi 0, %s155
    %s170 = sphi 0, %s156
    %s174 = sphi 0, %s174
    %s176 = sphi 0, %s174
    %s177 = sphi 0, %s176
    %s191 = sphi 0, %s177
    %s197 = sphi 0, %s199
    %s200 = sphi 0, %s197
    %s201 = sphi 0, %s200
    %s217 = sphi 0, %s201
  $region4: #{pretrained_frozen_forward.1} parent=0 // loop_header_branch
    %17 = sbr.rel (%p15) target = $region8
  $region5: #{pretrained_frozen_forward.1} parent=0 // loop_body
    %s19 = ssub.s32 %s14, 1
    %s20 = ssub.s32 %s14, 2
    %s21 = sadd.s32 %s14, 1
    %s22 = ssub.s32 %s14, %s21
    %p23 = scmp.eq.s32.totalorder %s22, 0
    %s25 = sadd.s32 %s24, 1
    %s26 = scalar_select %p23, %s24, %s25
    %p29 = pneg %p23
    %p30 = scmp.eq.s32.totalorder %s14, 1
    %p31 = por %p29, %p30
    %p32 = scmp.ne.s32.totalorder %s24, %s27
    %p33 = scmp.eq.s32.totalorder %s14, 0
    %p34 = por %p32, %p33
    %p35 = scmp.ne.s32.totalorder %s24, %s27
    %p36 = scmp.eq.s32.totalorder %s19, 1
    %p37 = por %p35, %p36
    %p38 = scmp.ne.s32.totalorder %s27, %s28
    %p39 = scmp.eq.s32.totalorder %s19, 0
    %p40 = por %p38, %p39
    %p41 = scmp.ne.s32.totalorder %s27, %s28
    %p42 = scmp.eq.s32.totalorder %s20, 1
    %p43 = por %p41, %p42
    %p45 = scmp.ne.s32.totalorder %s28, %s44
    %p46 = scmp.eq.s32.totalorder %s20, 0
    %p47 = por %p45, %p46
    %s49 = sadd.s32 %s48, 1
    %p52 = scmp.eq.s32.totalorder %s14, 1
    %p53 = scmp.ne.s32.totalorder %s48, %s50
    %p54 = scmp.eq.s32.totalorder %s14, 0
    %p55 = por %p53, %p54
    %p56 = scmp.ne.s32.totalorder %s48, %s50
    %p57 = scmp.eq.s32.totalorder %s19, 1
    %p58 = por %p56, %p57
    %p59 = scmp.ne.s32.totalorder %s50, %s51
    %p60 = scmp.eq.s32.totalorder %s19, 0
    %p61 = por %p59, %p60
    %p62 = scmp.ne.s32.totalorder %s50, %s51
    %p63 = scmp.eq.s32.totalorder %s20, 1
    %p64 = por %p62, %p63
    %p66 = scmp.ne.s32.totalorder %s51, %s65
    %p67 = scmp.eq.s32.totalorder %s20, 0
    %p68 = por %p66, %p67
    %s70 = sadd.s32 %s69, 1
    %p73 = scmp.eq.s32.totalorder %s14, 1
    %p74 = scmp.ne.s32.totalorder %s69, %s71
    %p75 = scmp.eq.s32.totalorder %s14, 0
    %p76 = por %p74, %p75
    %p77 = scmp.ne.s32.totalorder %s69, %s71
    %p78 = scmp.eq.s32.totalorder %s19, 1
    %p79 = por %p77, %p78
    %p80 = scmp.ne.s32.totalorder %s71, %s72
    %p81 = scmp.eq.s32.totalorder %s19, 0
    %p82 = por %p80, %p81
    %p83 = scmp.ne.s32.totalorder %s71, %s72
    %p84 = scmp.eq.s32.totalorder %s20, 1
    %p85 = por %p83, %p84
    %p87 = scmp.ne.s32.totalorder %s72, %s86
    %p88 = scmp.eq.s32.totalorder %s20, 0
    %p89 = por %p87, %p88
    %s91 = sadd.s32 %s90, 1
    %p94 = scmp.eq.s32.totalorder %s14, 1
    %p95 = scmp.ne.s32.totalorder %s90, %s92
    %p96 = scmp.eq.s32.totalorder %s14, 0
    %p97 = por %p95, %p96
    %p98 = scmp.ne.s32.totalorder %s90, %s92
    %p99 = scmp.eq.s32.totalorder %s19, 1
    %p100 = por %p98, %p99
    %p101 = scmp.ne.s32.totalorder %s92, %s93
    %p102 = scmp.eq.s32.totalorder %s19, 0
    %p103 = por %p101, %p102
    %p104 = scmp.ne.s32.totalorder %s92, %s93
    %p105 = scmp.eq.s32.totalorder %s20, 1
    %p106 = por %p104, %p105
    %p108 = scmp.ne.s32.totalorder %s93, %s107
    %p109 = scmp.eq.s32.totalorder %s20, 0
    %p110 = por %p108, %p109
    %s112 = sadd.s32 %s111, 1
    %p115 = scmp.eq.s32.totalorder %s14, 1
    %p116 = scmp.ne.s32.totalorder %s111, %s113
    %p117 = scmp.eq.s32.totalorder %s14, 0
    %p118 = por %p116, %p117
    %p119 = scmp.ne.s32.totalorder %s111, %s113
    %p120 = scmp.eq.s32.totalorder %s19, 1
    %p121 = por %p119, %p120
    %p122 = scmp.ne.s32.totalorder %s113, %s114
    %p123 = scmp.eq.s32.totalorder %s19, 0
    %p124 = por %p122, %p123
    %p125 = scmp.ne.s32.totalorder %s113, %s114
    %p126 = scmp.eq.s32.totalorder %s20, 1
    %p127 = por %p125, %p126
    %p129 = scmp.ne.s32.totalorder %s114, %s128
    %p130 = scmp.eq.s32.totalorder %s20, 0
    %p131 = por %p129, %p130
    %s133 = sadd.s32 %s132, 1
    %p136 = scmp.eq.s32.totalorder %s14, 1
    %p137 = scmp.ne.s32.totalorder %s132, %s134
    %p138 = scmp.eq.s32.totalorder %s14, 0
    %p139 = por %p137, %p138
    %p140 = scmp.ne.s32.totalorder %s132, %s134
    %p141 = scmp.eq.s32.totalorder %s19, 1
    %p142 = por %p140, %p141
    %p143 = scmp.ne.s32.totalorder %s134, %s135
    %p144 = scmp.eq.s32.totalorder %s19, 0
    %p145 = por %p143, %p144
    %p146 = scmp.ne.s32.totalorder %s134, %s135
    %p147 = scmp.eq.s32.totalorder %s20, 1
    %p148 = por %p146, %p147
    %p150 = scmp.ne.s32.totalorder %s135, %s149
    %p151 = scmp.eq.s32.totalorder %s20, 0
    %p152 = por %p150, %p151
    %s154 = sadd.s32 %s153, 1
    %p157 = scmp.eq.s32.totalorder %s14, 1
    %p158 = scmp.ne.s32.totalorder %s153, %s155
    %p159 = scmp.eq.s32.totalorder %s14, 0
    %p160 = por %p158, %p159
    %p161 = scmp.ne.s32.totalorder %s153, %s155
    %p162 = scmp.eq.s32.totalorder %s19, 1
    %p163 = por %p161, %p162
    %p164 = scmp.ne.s32.totalorder %s155, %s156
    %p165 = scmp.eq.s32.totalorder %s19, 0
    %p166 = por %p164, %p165
    %p167 = scmp.ne.s32.totalorder %s155, %s156
    %p168 = scmp.eq.s32.totalorder %s20, 1
    %p169 = por %p167, %p168
    %p171 = scmp.ne.s32.totalorder %s156, %s170
    %p172 = scmp.eq.s32.totalorder %s20, 0
    %p173 = por %p171, %p172
    %s175 = sadd.s32 %s174, 1
    %p178 = scmp.eq.s32.totalorder %s14, 1
    %p179 = scmp.ne.s32.totalorder %s174, %s176
    %p180 = scmp.eq.s32.totalorder %s14, 0
    %p181 = por %p179, %p180
    %p182 = scmp.ne.s32.totalorder %s174, %s176
    %p183 = scmp.eq.s32.totalorder %s19, 1
    %p184 = por %p182, %p183
    %p185 = scmp.ne.s32.totalorder %s176, %s177
    %p186 = scmp.eq.s32.totalorder %s19, 0
    %p187 = por %p185, %p186
    %p188 = scmp.ne.s32.totalorder %s176, %s177
    %p189 = scmp.eq.s32.totalorder %s20, 1
    %p190 = por %p188, %p189
    %p192 = scmp.ne.s32.totalorder %s177, %s191
    %p193 = scmp.eq.s32.totalorder %s20, 0
    %p194 = por %p192, %p193
    %s195 = ssub.s32 %s14, %s21
    %p196 = scmp.eq.s32.totalorder %s195, 0
    %s198 = sadd.s32 %s197, 1
    %s199 = scalar_select %p196, %s197, %s198
    %p202 = pneg %p196
    %p203 = scmp.eq.s32.totalorder %s14, 1
    %p204 = por %p202, %p203
    %p205 = scmp.ne.s32.totalorder %s197, %s200
    %p206 = scmp.eq.s32.totalorder %s14, 0
    %p207 = por %p205, %p206
    %p208 = scmp.ne.s32.totalorder %s197, %s200
    %p209 = scmp.eq.s32.totalorder %s19, 1
    %p210 = por %p208, %p209
    %p211 = scmp.ne.s32.totalorder %s200, %s201
    %p212 = scmp.eq.s32.totalorder %s19, 0
    %p213 = por %p211, %p212
    %p214 = scmp.ne.s32.totalorder %s200, %s201
    %p215 = scmp.eq.s32.totalorder %s20, 1
    %p216 = por %p214, %p215
    %p218 = scmp.ne.s32.totalorder %s201, %s217
    %p219 = scmp.eq.s32.totalorder %s20, 0
    %p220 = por %p218, %p219
    %p221 = scmp.le.s32.totalorder 1, %s14
    %p222 = scmp.lt.s32.totalorder %s14, 3
    %p223 = pnand %p221, %p222
    %p224 = pneg %p223
    // Predicated region
    $region9: #{pretrained_frozen_forward.1} parent=5 // pred_check
      _
    $region10: #{pretrained_frozen_forward.1} parent=5 // pred_check_branch
      %226 = sbr.rel (%p223) target = $region12
    $region11: #{pretrained_frozen_forward.1} parent=5 // pred_region
      %s227 = ssub.s32 %s14, 1
      // Predicated region
      $region13: #{pretrained_frozen_forward.1} parent=11 // pred_check
        %p228 = pneg %p61
      $region14: #{pretrained_frozen_forward.1} parent=11 // pred_check_branch
        %230 = sbr.rel (%p228) target = $region16
      $region15: #{pretrained_frozen_forward.1} parent=11 // pred_region
        _
      $region16: #{pretrained_frozen_forward.1} parent=11 // pred_fallthru
        _
      // Predicated region
      $region17: #{pretrained_frozen_forward.1} parent=11 // pred_check
        %p231 = pneg %p82
      $region18: #{pretrained_frozen_forward.1} parent=11 // pred_check_branch
        %233 = sbr.rel (%p231) target = $region20
      $region19: #{pretrained_frozen_forward.1} parent=11 // pred_region
        _
      $region20: #{pretrained_frozen_forward.1} parent=11 // pred_fallthru
        _
      // Predicated region
      $region21: #{pretrained_frozen_forward.1} parent=11 // pred_check
        %p234 = pneg %p103
      $region22: #{pretrained_frozen_forward.1} parent=11 // pred_check_branch
        %236 = sbr.rel (%p234) target = $region24
      $region23: #{pretrained_frozen_forward.1} parent=11 // pred_region
        _
      $region24: #{pretrained_frozen_forward.1} parent=11 // pred_fallthru
        _
      // Predicated region
      $region25: #{pretrained_frozen_forward.1} parent=11 // pred_check
        %p237 = pneg %p124
      $region26: #{pretrained_frozen_forward.1} parent=11 // pred_check_branch
        %239 = sbr.rel (%p237) target = $region28
      $region27: #{pretrained_frozen_forward.1} parent=11 // pred_region
        _
      $region28: #{pretrained_frozen_forward.1} parent=11 // pred_fallthru
        _
      // Predicated region
      $region29: #{pretrained_frozen_forward.1} parent=11 // pred_check
        %p240 = pneg %p145
      $region30: #{pretrained_frozen_forward.1} parent=11 // pred_check_branch
        %242 = sbr.rel (%p240) target = $region32
      $region31: #{pretrained_frozen_forward.1} parent=11 // pred_region
        _
      $region32: #{pretrained_frozen_forward.1} parent=11 // pred_fallthru
        _
      // Predicated region
      $region33: #{pretrained_frozen_forward.1} parent=11 // pred_check
        %p243 = pneg %p166
      $region34: #{pretrained_frozen_forward.1} parent=11 // pred_check_branch
        %245 = sbr.rel (%p243) target = $region36
      $region35: #{pretrained_frozen_forward.1} parent=11 // pred_region
        _
      $region36: #{pretrained_frozen_forward.1} parent=11 // pred_fallthru
        _
      // Predicated region
      $region37: #{pretrained_frozen_forward.1} parent=11 // pred_check
        %p246 = pneg %p187
      $region38: #{pretrained_frozen_forward.1} parent=11 // pred_check_branch
        %248 = sbr.rel (%p246) target = $region40
      $region39: #{pretrained_frozen_forward.1} parent=11 // pred_region
        _
      $region40: #{pretrained_frozen_forward.1} parent=11 // pred_fallthru
        _
    $region12: #{pretrained_frozen_forward.1} parent=5 // pred_fallthru
      _
    %p249 = scmp.lt.s32.totalorder %s14, 2
    // Predicated region
    $region41: #{pretrained_frozen_forward.1} parent=5 // pred_check
      %p250 = pneg %p249
    $region42: #{pretrained_frozen_forward.1} parent=5 // pred_check_branch
      %252 = sbr.rel (%p250) target = $region44
    $region43: #{pretrained_frozen_forward.1} parent=5 // pred_region
      // Predicated region
      $region45: #{pretrained_frozen_forward.1} parent=43 // pred_check
        %p253 = pneg %p34
      $region46: #{pretrained_frozen_forward.1} parent=43 // pred_check_branch
        %255 = sbr.rel (%p253) target = $region48
      $region47: #{pretrained_frozen_forward.1} parent=43 // pred_region
        %p256 = scmp.lt.s32.totalorder %s14, 1
        %s257 = scalar_select %p256, %s14, 1
        %s258 = smul.addr %s257, 8
        %s259 = smul.addr %s258, 4
        %s260 = scalar_lea.vmem %s0, %s259
      $region48: #{pretrained_frozen_forward.1} parent=43 // pred_fallthru
        _
    $region44: #{pretrained_frozen_forward.1} parent=5 // pred_fallthru
      _
    %p261 = scmp.le.s32.totalorder 1, %s14
    %p262 = scmp.lt.s32.totalorder %s14, 3
    %p263 = pnand %p261, %p262
    %p264 = pneg %p263
    // Predicated region
    $region49: #{pretrained_frozen_forward.1} parent=5 // pred_check
      _
    $region50: #{pretrained_frozen_forward.1} parent=5 // pred_check_branch
      %266 = sbr.rel (%p263) target = $region52
    $region51: #{pretrained_frozen_forward.1} parent=5 // pred_region
      %s267 = ssub.s32 %s14, 1
      %p268 = scmp.lt.s32.totalorder %s19, 1
      %s269 = scalar_select %p268, %s19, 1
      %s270 = smul.addr %s269, 8
      %s271 = smul.addr %s270, 4
      %s272 = scalar_lea.vmem %s0, %s271
      %p273 = pneg %p40
      %p274 = pneg %p37
      %p275 = pneg %p61
      %p276 = pneg %p58
      %p277 = pneg %p82
      %p278 = pneg %p79
      %p279 = pneg %p103
      %p280 = pneg %p100
      %p281 = pneg %p124
      %p282 = pneg %p121
      %p283 = pneg %p145
      %p284 = pneg %p142
      %p285 = pneg %p166
      %p286 = pneg %p163
      %p287 = pneg %p187
      %p288 = pneg %p184
      %p289 = pneg %p213
      %p290 = pneg %p210
      %p291 = scmp.lt.s32.totalorder %s19, 1
      %s292 = scalar_select %p291, %s19, 1
      %s293 = scalar_lea.vmem %s8, %s292
      %p294 = scmp.lt.s32.totalorder %s19, 1
      %s295 = scalar_select %p294, %s19, 1
      %s296 = smul.addr %s295, 8
      %s297 = smul.addr %s296, 4
      %s298 = scalar_lea.vmem %s0, %s297
      %p299 = scmp.lt.s32.totalorder %s19, 1
      %s300 = scalar_select %p299, %s19, 1
      %s301 = scalar_lea.vmem %s8, %s300
      %v303 = vld [vmem:[%s298] sm:$0xf]
      %v304 = vld [vmem:[%s298 + $0x4] sm:$0xf]
      %v305 = vld [vmem:[%s298 + $0x8] sm:$0xf]
      %v306 = vld [vmem:[%s298 + $0xc] sm:$0xf]
      %v307 = vld [vmem:[%s298 + $0x10] sm:$0xf]
      %v308 = vld [vmem:[%s298 + $0x14] sm:$0xf]
      %v309 = vld [vmem:[%s298 + $0x18] sm:$0xf]
      %v310 = vld [vmem:[%s298 + $0x1c] sm:$0xf]
      %v311 = vld [vmem:[%s1] sm:$0xf]
      %v312 = vld [vmem:[%s1 + $0x4] sm:$0xf]
      %v313 = vld [vmem:[%s1 + $0x8] sm:$0xf]
      %v314 = vld [vmem:[%s1 + $0xc] sm:$0xf]
      %v315 = vld [vmem:[%s2] sm:$0x1]
      %v317 = vlaneseq
      %v318 = vshrl.u32 %v317, 7
      %v319 = vsub.s32 0, %v318
      %v320 = vrot.slane %v315, %v319
      %v330 = vunpack.c.l.b16 %v303
      %v331 = vunpack.c.l.b16 %v304
      %v332 = vunpack.c.l.b16 %v305
      %v333 = vunpack.c.l.b16 %v306
      %v334 = vunpack.c.l.b16 %v307
      %v335 = vunpack.c.l.b16 %v308
      %v336 = vunpack.c.l.b16 %v309
      %v337 = vunpack.c.l.b16 %v310
      %v338 = vpack.c.b16 %v331, %v330
      %v339 = vpack.c.b16 %v333, %v332
      %v340 = vpack.c.b16 %v335, %v334
      %v341 = vpack.c.b16 %v337, %v336
      %v346 = vunpack.c.l.b16 %v311
      %v347 = vunpack.c.l.b16 %v312
      %v348 = vunpack.c.l.b16 %v313
      %v349 = vunpack.c.l.b16 %v314
      %v350 = vpack.c.b16 %v347, %v346
      %v351 = vpack.c.b16 %v349, %v348
      %vm354 = vcmask 261120
      %v356 = vsel %vm354, %v338, 0
      %v359 = vsel %vm354, %v339, 0
      %v362 = vsel %vm354, %v340, 0
      %v365 = vsel %vm354, %v341, 0
      %367 = vmatprep.subr.bf16.mxu0 0
      %368 = vmatpush1.bf16.msra.mxu0 %v350
      %369 = vmatprep.subr.bf16.mxu0 0
      %370 = vmatpush1.bf16.msra.mxu0 %v351
      %371 = vmatprep.subr.bf16.mxu0 0
      %372 = vmatpush1.bf16.msra.mxu0 0
      %373 = vmatprep.subr.bf16.mxu0 0
      %374 = vmatpush1.bf16.msra.mxu0 0
      %375 = vmatprep.subr.bf16.mxu0 0
      %376 = vmatpush1.bf16.msra.mxu0 0
      %377 = vmatprep.subr.bf16.mxu0 0
      %378 = vmatpush1.bf16.msra.mxu0 0
      %379 = vmatprep.subr.bf16.mxu0 0
      %380 = vmatpush1.bf16.msra.mxu0 0
      %381 = vmatprep.subr.bf16.mxu0 0
      %382 = vmatpush1.bf16.msra.mxu0 0
      %383 = vmatprep.subr.bf16.mxu0 0
      %384 = vmatpush1.bf16.msra.mxu0 0
      %385 = vmatprep.subr.bf16.mxu0 0
      %386 = vmatpush1.bf16.msra.mxu0 0
      %387 = vmatprep.subr.bf16.mxu0 0
      %388 = vmatpush1.bf16.msra.mxu0 0
      %389 = vmatprep.subr.bf16.mxu0 0
      %390 = vmatpush1.bf16.msra.mxu0 0
      %391 = vmatprep.subr.bf16.mxu0 0
      %392 = vmatpush1.bf16.msra.mxu0 0
      %393 = vmatprep.subr.bf16.mxu0 0
      %394 = vmatpush1.bf16.msra.mxu0 0
      %395 = vmatprep.subr.bf16.mxu0 0
      %396 = vmatpush1.bf16.msra.mxu0 0
      %397 = vmatprep.subr.bf16.mxu0 0
      %398 = vmatpush1.bf16.msra.mxu0 0
      %399 = vmatprep.mubr.bf16.mxu0 0
      %400 = vmatmul.mubr.bf16.gmra.mrb[0].mxu0 %v356
      %v401 = vpop.f32.mrb[0].mxu0
      %v402 = vadd.f32 %v320, %v401
      %v403 = vpop.f32.mrb[0].mxu0
      %v404 = vpop.f32.mrb[0].mxu0
      %v405 = vadd.f32 %v320, %v404
      %v406 = vpop.f32.mrb[0].mxu0
      %407 = vmatprep.mubr.bf16.mxu0 0
      %408 = vmatmul.mubr.bf16.gmra.mrb[0].mxu0 %v359
      %v409 = vpop.f32.mrb[0].mxu0
      %v410 = vadd.f32 %v320, %v409
      %v411 = vpop.f32.mrb[0].mxu0
      %v412 = vpop.f32.mrb[0].mxu0
      %v413 = vadd.f32 %v320, %v412
      %v414 = vpop.f32.mrb[0].mxu0
      %415 = vmatprep.mubr.bf16.mxu0 0
      %416 = vmatmul.mubr.bf16.gmra.mrb[0].mxu0 %v362
      %v417 = vpop.f32.mrb[0].mxu0
      %v418 = vadd.f32 %v320, %v417
      %v419 = vpop.f32.mrb[0].mxu0
      %v420 = vpop.f32.mrb[0].mxu0
      %v421 = vadd.f32 %v320, %v420
      %v422 = vpop.f32.mrb[0].mxu0
      %423 = vmatprep.mubr.bf16.mxu0 0
      %424 = vmatmul.mubr.bf16.gmra.mrb[0].mxu0 %v365
      %v425 = vpop.f32.mrb[0].mxu0
      %v426 = vadd.f32 %v320, %v425
      %v427 = vpop.f32.mrb[0].mxu0
      %v428 = vpop.f32.mrb[0].mxu0
      %v429 = vadd.f32 %v320, %v428
      %v430 = vpop.f32.mrb[0].mxu0
      %431 = vdwg.mxu0
      %v432 = vmax.f32 %v402, 0.0
      %v433 = vmax.f32 %v405, 0.0
      %v434 = vmax.f32 %v410, 0.0
      %v435 = vmax.f32 %v413, 0.0
      %v436 = vmax.f32 %v418, 0.0
      %v437 = vmax.f32 %v421, 0.0
      %v438 = vmax.f32 %v426, 0.0
      %v439 = vmax.f32 %v429, 0.0
      %v440 = vpack.c.bf16 %v433, %v432
      %v441 = vpack.c.bf16 %v435, %v434
      %v442 = vpack.c.bf16 %v437, %v436
      %v443 = vpack.c.bf16 %v439, %v438
      %v444 = vld [vmem:[%s3] sm:$0xf]
      %v445 = vld [vmem:[%s3 + $0x4] sm:$0xf]
      %v448 = vunpack.c.l.b16 %v444
      %v449 = vunpack.c.l.b16 %v445
      %v450 = vpack.c.b16 %v449, %v448
      %vm451 = vcmask 523264
      %v453 = vsel %vm451, %v450, 0
      %455 = vmatprep.subr.bf16.mxu0 0
      %456 = vmatpush1.bf16.msra.mxu0 %v440
      %457 = vmatprep.subr.bf16.mxu0 0
      %458 = vmatpush1.bf16.msra.mxu0 %v441
      %459 = vmatprep.subr.bf16.mxu0 0
      %460 = vmatpush1.bf16.msra.mxu0 %v442
      %461 = vmatprep.subr.bf16.mxu0 0
      %462 = vmatpush1.bf16.msra.mxu0 %v443
      %463 = vmatprep.subr.bf16.mxu0 0
      %464 = vmatpush1.bf16.msra.mxu0 0
      %465 = vmatprep.subr.bf16.mxu0 0
      %466 = vmatpush1.bf16.msra.mxu0 0
      %467 = vmatprep.subr.bf16.mxu0 0
      %468 = vmatpush1.bf16.msra.mxu0 0
      %469 = vmatprep.subr.bf16.mxu0 0
      %470 = vmatpush1.bf16.msra.mxu0 0
      %471 = vmatprep.subr.bf16.mxu0 0
      %472 = vmatpush1.bf16.msra.mxu0 0
      %473 = vmatprep.subr.bf16.mxu0 0
      %474 = vmatpush1.bf16.msra.mxu0 0
      %475 = vmatprep.subr.bf16.mxu0 0
      %476 = vmatpush1.bf16.msra.mxu0 0
      %477 = vmatprep.subr.bf16.mxu0 0
      %478 = vmatpush1.bf16.msra.mxu0 0
      %479 = vmatprep.subr.bf16.mxu0 0
      %480 = vmatpush1.bf16.msra.mxu0 0
      %481 = vmatprep.subr.bf16.mxu0 0
      %482 = vmatpush1.bf16.msra.mxu0 0
      %483 = vmatprep.subr.bf16.mxu0 0
      %484 = vmatpush1.bf16.msra.mxu0 0
      %485 = vmatprep.subr.bf16.mxu0 0
      %486 = vmatpush1.bf16.msra.mxu0 0
      %487 = vmatprep.mubr.bf16.mxu0 0
      %488 = vmatmul.mubr.bf16.gmra.mrb[0].mxu0 %v453
      %v489 = vpop.f32.mrb[0].mxu0
      %v490 = vadd.f32 0.0, %v489
      %v491 = vpop.f32.mrb[0].mxu0
      %v492 = vpop.f32.mrb[0].mxu0
      %v493 = vadd.f32 0.0, %v492
      %v494 = vpop.f32.mrb[0].mxu0
      %495 = vdwg.mxu0
      %v496 = vpack.c.bf16 %v493, %v490
      %v497 = vld [vmem:[%s4] sm:$0xf]
      %v498 = vld [vmem:[%s4 + $0x4] sm:$0xf]
      %s499 = scalar_lea.vmem %s3, 8
      %v500 = vld [vmem:[%s499] sm:$0xf]
      %v501 = vld [vmem:[%s499 + $0x4] sm:$0xf]
      %v504 = vunpack.c.l.b16 %v500
      %v505 = vunpack.c.l.b16 %v501
      %v506 = vpack.c.b16 %v505, %v504
      %v508 = vsel %vm451, %v506, 0
      %510 = vmatprep.subr.bf16.mxu0 0
      %511 = vmatpush1.bf16.msra.mxu0 %v440
      %512 = vmatprep.subr.bf16.mxu0 0
      %513 = vmatpush1.bf16.msra.mxu0 %v441
      %514 = vmatprep.subr.bf16.mxu0 0
      %515 = vmatpush1.bf16.msra.mxu0 %v442
      %516 = vmatprep.subr.bf16.mxu0 0
      %517 = vmatpush1.bf16.msra.mxu0 %v443
      %518 = vmatprep.subr.bf16.mxu0 0
      %519 = vmatpush1.bf16.msra.mxu0 0
      %520 = vmatprep.subr.bf16.mxu0 0
      %521 = vmatpush1.bf16.msra.mxu0 0
      %522 = vmatprep.subr.bf16.mxu0 0
      %523 = vmatpush1.bf16.msra.mxu0 0
      %524 = vmatprep.subr.bf16.mxu0 0
      %525 = vmatpush1.bf16.msra.mxu0 0
      %526 = vmatprep.subr.bf16.mxu0 0
      %527 = vmatpush1.bf16.msra.mxu0 0
      %528 = vmatprep.subr.bf16.mxu0 0
      %529 = vmatpush1.bf16.msra.mxu0 0
      %530 = vmatprep.subr.bf16.mxu0 0
      %531 = vmatpush1.bf16.msra.mxu0 0
      %532 = vmatprep.subr.bf16.mxu0 0
      %533 = vmatpush1.bf16.msra.mxu0 0
      %534 = vmatprep.subr.bf16.mxu0 0
      %535 = vmatpush1.bf16.msra.mxu0 0
      %536 = vmatprep.subr.bf16.mxu0 0
      %537 = vmatpush1.bf16.msra.mxu0 0
      %538 = vmatprep.subr.bf16.mxu0 0
      %539 = vmatpush1.bf16.msra.mxu0 0
      %540 = vmatprep.subr.bf16.mxu0 0
      %541 = vmatpush1.bf16.msra.mxu0 0
      %542 = vmatprep.mubr.bf16.mxu0 0
      %543 = vmatmul.mubr.bf16.gmra.mrb[0].mxu0 %v508
      %v544 = vpop.f32.mrb[0].mxu0
      %v545 = vadd.f32 0.0, %v544
      %v546 = vpop.f32.mrb[0].mxu0
      %v547 = vpop.f32.mrb[0].mxu0
      %v548 = vadd.f32 0.0, %v547
      %v549 = vpop.f32.mrb[0].mxu0
      %550 = vdwg.mxu0
      %v551 = vpack.c.bf16 %v548, %v545
      %s552 = scalar_lea.vmem %s4, 8
      %v553 = vld [vmem:[%s552] sm:$0xf]
      %v554 = vld [vmem:[%s552 + $0x4] sm:$0xf]
      %v557 = vunpack.c.l.b16 %v553
      %v558 = vunpack.c.l.b16 %v554
      %v559 = vpack.c.b16 %v558, %v557
      %vm561 = vcmask 130048
      %v563 = vsel %vm561, %v551, 0
      %565 = vmatprep.subr.bf16.mxu0 0
      %566 = vmatpush1.bf16.msra.mxu0 %v559
      %567 = vmatprep.subr.bf16.mxu0 0
      %568 = vmatpush1.bf16.msra.mxu0 0
      %569 = vmatprep.subr.bf16.mxu0 0
      %570 = vmatpush1.bf16.msra.mxu0 0
      %571 = vmatprep.subr.bf16.mxu0 0
      %572 = vmatpush1.bf16.msra.mxu0 0
      %573 = vmatprep.subr.bf16.mxu0 0
      %574 = vmatpush1.bf16.msra.mxu0 0
      %575 = vmatprep.subr.bf16.mxu0 0
      %576 = vmatpush1.bf16.msra.mxu0 0
      %577 = vmatprep.subr.bf16.mxu0 0
      %578 = vmatpush1.bf16.msra.mxu0 0
      %579 = vmatprep.subr.bf16.mxu0 0
      %580 = vmatpush1.bf16.msra.mxu0 0
      %581 = vmatprep.subr.bf16.mxu0 0
      %582 = vmatpush1.bf16.msra.mxu0 0
      %583 = vmatprep.subr.bf16.mxu0 0
      %584 = vmatpush1.bf16.msra.mxu0 0
      %585 = vmatprep.subr.bf16.mxu0 0
      %586 = vmatpush1.bf16.msra.mxu0 0
      %587 = vmatprep.subr.bf16.mxu0 0
      %588 = vmatpush1.bf16.msra.mxu0 0
      %589 = vmatprep.subr.bf16.mxu0 0
      %590 = vmatpush1.bf16.msra.mxu0 0
      %591 = vmatprep.subr.bf16.mxu0 0
      %592 = vmatpush1.bf16.msra.mxu0 0
      %593 = vmatprep.subr.bf16.mxu0 0
      %594 = vmatpush1.bf16.msra.mxu0 0
      %595 = vmatprep.subr.bf16.mxu0 0
      %596 = vmatpush1.bf16.msra.mxu0 0
      %597 = vmatprep.mubr.bf16.mxu0 0
      %598 = vmatmul.mubr.bf16.gmra.mrb[0].mxu0 %v563
      %v599 = vpop.f32.mrb[0].mxu0
      %v600 = vadd.f32 0.0, %v599
      %v601 = vpop.f32.mrb[0].mxu0
      %v602 = vpop.f32.mrb[0].mxu0
      %v603 = vadd.f32 0.0, %v602
      %v604 = vpop.f32.mrb[0].mxu0
      %605 = vdwg.mxu0
      %v608 = vunpack.c.l.b16 %v497
      %v609 = vunpack.c.l.b16 %v498
      %v610 = vpack.c.b16 %v609, %v608
      %v613 = vsel %vm561, %v496, 0
      %615 = vmatprep.subr.bf16.mxu0 0
      %616 = vmatpush1.bf16.msra.mxu0 %v610
      %617 = vmatprep.subr.bf16.mxu0 0
      %618 = vmatpush1.bf16.msra.mxu0 0
      %619 = vmatprep.subr.bf16.mxu0 0
      %620 = vmatpush1.bf16.msra.mxu0 0
      %621 = vmatprep.subr.bf16.mxu0 0
      %622 = vmatpush1.bf16.msra.mxu0 0
      %623 = vmatprep.subr.bf16.mxu0 0
      %624 = vmatpush1.bf16.msra.mxu0 0
      %625 = vmatprep.subr.bf16.mxu0 0
      %626 = vmatpush1.bf16.msra.mxu0 0
      %627 = vmatprep.subr.bf16.mxu0 0
      %628 = vmatpush1.bf16.msra.mxu0 0
      %629 = vmatprep.subr.bf16.mxu0 0
      %630 = vmatpush1.bf16.msra.mxu0 0
      %631 = vmatprep.subr.bf16.mxu0 0
      %632 = vmatpush1.bf16.msra.mxu0 0
      %633 = vmatprep.subr.bf16.mxu0 0
      %634 = vmatpush1.bf16.msra.mxu0 0
      %635 = vmatprep.subr.bf16.mxu0 0
      %636 = vmatpush1.bf16.msra.mxu0 0
      %637 = vmatprep.subr.bf16.mxu0 0
      %638 = vmatpush1.bf16.msra.mxu0 0
      %639 = vmatprep.subr.bf16.mxu0 0
      %640 = vmatpush1.bf16.msra.mxu0 0
      %641 = vmatprep.subr.bf16.mxu0 0
      %642 = vmatpush1.bf16.msra.mxu0 0
      %643 = vmatprep.subr.bf16.mxu0 0
      %644 = vmatpush1.bf16.msra.mxu0 0
      %645 = vmatprep.subr.bf16.mxu0 0
      %646 = vmatpush1.bf16.msra.mxu0 0
      %647 = vmatprep.mubr.bf16.mxu0 0
      %648 = vmatmul.mubr.bf16.gmra.mrb[0].mxu0 %v613
      %v649 = vpop.f32.mrb[0].mxu0
      %v650 = vadd.f32 %v600, %v649
      %v651 = vpop.f32.mrb[0].mxu0
      %v652 = vpop.f32.mrb[0].mxu0
      %v653 = vadd.f32 %v603, %v652
      %v654 = vpop.f32.mrb[0].mxu0
      %655 = vdwg.mxu0
      %s656 = scalar_lea.vmem %s3, 16
      %v657 = vld [vmem:[%s656] sm:$0xf]
      %v658 = vld [vmem:[%s656 + $0x4] sm:$0xf]
      %v661 = vunpack.c.l.b16 %v657
      %v662 = vunpack.c.l.b16 %v658
      %v663 = vpack.c.b16 %v662, %v661
      %v665 = vsel %vm451, %v663, 0
      %667 = vmatprep.subr.bf16.mxu0 0
      %668 = vmatpush1.bf16.msra.mxu0 %v440
      %669 = vmatprep.subr.bf16.mxu0 0
      %670 = vmatpush1.bf16.msra.mxu0 %v441
      %671 = vmatprep.subr.bf16.mxu0 0
      %672 = vmatpush1.bf16.msra.mxu0 %v442
      %673 = vmatprep.subr.bf16.mxu0 0
      %674 = vmatpush1.bf16.msra.mxu0 %v443
      %675 = vmatprep.subr.bf16.mxu0 0
      %676 = vmatpush1.bf16.msra.mxu0 0
      %677 = vmatprep.subr.bf16.mxu0 0
      %678 = vmatpush1.bf16.msra.mxu0 0
      %679 = vmatprep.subr.bf16.mxu0 0
      %680 = vmatpush1.bf16.msra.mxu0 0
      %681 = vmatprep.subr.bf16.mxu0 0
      %682 = vmatpush1.bf16.msra.mxu0 0
      %683 = vmatprep.subr.bf16.mxu0 0
      %684 = vmatpush1.bf16.msra.mxu0 0
      %685 = vmatprep.subr.bf16.mxu0 0
      %686 = vmatpush1.bf16.msra.mxu0 0
      %687 = vmatprep.subr.bf16.mxu0 0
      %688 = vmatpush1.bf16.msra.mxu0 0
      %689 = vmatprep.subr.bf16.mxu0 0
      %690 = vmatpush1.bf16.msra.mxu0 0
      %691 = vmatprep.subr.bf16.mxu0 0
      %692 = vmatpush1.bf16.msra.mxu0 0
      %693 = vmatprep.subr.bf16.mxu0 0
      %694 = vmatpush1.bf16.msra.mxu0 0
      %695 = vmatprep.subr.bf16.mxu0 0
      %696 = vmatpush1.bf16.msra.mxu0 0
      %697 = vmatprep.subr.bf16.mxu0 0
      %698 = vmatpush1.bf16.msra.mxu0 0
      %699 = vmatprep.mubr.bf16.mxu0 0
      %700 = vmatmul.mubr.bf16.gmra.mrb[0].mxu0 %v665
      %v701 = vpop.f32.mrb[0].mxu0
      %v702 = vadd.f32 0.0, %v701
      %v703 = vpop.f32.mrb[0].mxu0
      %v704 = vpop.f32.mrb[0].mxu0
      %v705 = vadd.f32 0.0, %v704
      %v706 = vpop.f32.mrb[0].mxu0
      %707 = vdwg.mxu0
      %v708 = vpack.c.bf16 %v705, %v702
      %s709 = scalar_lea.vmem %s4, 16
      %v710 = vld [vmem:[%s709] sm:$0xf]
      %v711 = vld [vmem:[%s709 + $0x4] sm:$0xf]
      %v714 = vunpack.c.l.b16 %v710
      %v715 = vunpack.c.l.b16 %v711
      %v716 = vpack.c.b16 %v715, %v714
      %v719 = vsel %vm561, %v708, 0
      %721 = vmatprep.subr.bf16.mxu0 0
      %722 = vmatpush1.bf16.msra.mxu0 %v716
      %723 = vmatprep.subr.bf16.mxu0 0
      %724 = vmatpush1.bf16.msra.mxu0 0
      %725 = vmatprep.subr.bf16.mxu0 0
      %726 = vmatpush1.bf16.msra.mxu0 0
      %727 = vmatprep.subr.bf16.mxu0 0
      %728 = vmatpush1.bf16.msra.mxu0 0
      %729 = vmatprep.subr.bf16.mxu0 0
      %730 = vmatpush1.bf16.msra.mxu0 0
      %731 = vmatprep.subr.bf16.mxu0 0
      %732 = vmatpush1.bf16.msra.mxu0 0
      %733 = vmatprep.subr.bf16.mxu0 0
      %734 = vmatpush1.bf16.msra.mxu0 0
      %735 = vmatprep.subr.bf16.mxu0 0
      %736 = vmatpush1.bf16.msra.mxu0 0
      %737 = vmatprep.subr.bf16.mxu0 0
      %738 = vmatpush1.bf16.msra.mxu0 0
      %739 = vmatprep.subr.bf16.mxu0 0
      %740 = vmatpush1.bf16.msra.mxu0 0
      %741 = vmatprep.subr.bf16.mxu0 0
      %742 = vmatpush1.bf16.msra.mxu0 0
      %743 = vmatprep.subr.bf16.mxu0 0
      %744 = vmatpush1.bf16.msra.mxu0 0
      %745 = vmatprep.subr.bf16.mxu0 0
      %746 = vmatpush1.bf16.msra.mxu0 0
      %747 = vmatprep.subr.bf16.mxu0 0
      %748 = vmatpush1.bf16.msra.mxu0 0
      %749 = vmatprep.subr.bf16.mxu0 0
      %750 = vmatpush1.bf16.msra.mxu0 0
      %751 = vmatprep.subr.bf16.mxu0 0
      %752 = vmatpush1.bf16.msra.mxu0 0
      %753 = vmatprep.mubr.bf16.mxu0 0
      %754 = vmatmul.mubr.bf16.gmra.mrb[0].mxu0 %v719
      %v755 = vpop.f32.mrb[0].mxu0
      %v756 = vadd.f32 0.0, %v755
      %v757 = vpop.f32.mrb[0].mxu0
      %v758 = vpop.f32.mrb[0].mxu0
      %v759 = vadd.f32 0.0, %v758
      %v760 = vpop.f32.mrb[0].mxu0
      %761 = vdwg.mxu0
      %v762 = vadd.f32 %v650, %v756
      %v763 = vadd.f32 %v653, %v759
      %s764 = scalar_lea.vmem %s3, 24
      %v765 = vld [vmem:[%s764] sm:$0xf]
      %v766 = vld [vmem:[%s764 + $0x4] sm:$0xf]
      %v769 = vunpack.c.l.b16 %v765
      %v770 = vunpack.c.l.b16 %v766
      %v771 = vpack.c.b16 %v770, %v769
      %v773 = vsel %vm451, %v771, 0
      %775 = vmatprep.subr.bf16.mxu0 0
      %776 = vmatpush1.bf16.msra.mxu0 %v440
      %777 = vmatprep.subr.bf16.mxu0 0
      %778 = vmatpush1.bf16.msra.mxu0 %v441
      %779 = vmatprep.subr.bf16.mxu0 0
      %780 = vmatpush1.bf16.msra.mxu0 %v442
      %781 = vmatprep.subr.bf16.mxu0 0
      %782 = vmatpush1.bf16.msra.mxu0 %v443
      %783 = vmatprep.subr.bf16.mxu0 0
      %784 = vmatpush1.bf16.msra.mxu0 0
      %785 = vmatprep.subr.bf16.mxu0 0
      %786 = vmatpush1.bf16.msra.mxu0 0
      %787 = vmatprep.subr.bf16.mxu0 0
      %788 = vmatpush1.bf16.msra.mxu0 0
      %789 = vmatprep.subr.bf16.mxu0 0
      %790 = vmatpush1.bf16.msra.mxu0 0
      %791 = vmatprep.subr.bf16.mxu0 0
      %792 = vmatpush1.bf16.msra.mxu0 0
      %793 = vmatprep.subr.bf16.mxu0 0
      %794 = vmatpush1.bf16.msra.mxu0 0
      %795 = vmatprep.subr.bf16.mxu0 0
      %796 = vmatpush1.bf16.msra.mxu0 0
      %797 = vmatprep.subr.bf16.mxu0 0
      %798 = vmatpush1.bf16.msra.mxu0 0
      %799 = vmatprep.subr.bf16.mxu0 0
      %800 = vmatpush1.bf16.msra.mxu0 0
      %801 = vmatprep.subr.bf16.mxu0 0
      %802 = vmatpush1.bf16.msra.mxu0 0
      %803 = vmatprep.subr.bf16.mxu0 0
      %804 = vmatpush1.bf16.msra.mxu0 0
      %805 = vmatprep.subr.bf16.mxu0 0
      %806 = vmatpush1.bf16.msra.mxu0 0
      %807 = vmatprep.mubr.bf16.mxu0 0
      %808 = vmatmul.mubr.bf16.gmra.mrb[0].mxu0 %v773
      %v809 = vpop.f32.mrb[0].mxu0
      %v810 = vadd.f32 0.0, %v809
      %v811 = vpop.f32.mrb[0].mxu0
      %v812 = vpop.f32.mrb[0].mxu0
      %v813 = vadd.f32 0.0, %v812
      %v814 = vpop.f32.mrb[0].mxu0
      %815 = vdwg.mxu0
      %v816 = vpack.c.bf16 %v813, %v810
      %s817 = scalar_lea.vmem %s4, 24
      %v818 = vld [vmem:[%s817] sm:$0xf]
      %v819 = vld [vmem:[%s817 + $0x4] sm:$0xf]
      %v822 = vunpack.c.l.b16 %v818
      %v823 = vunpack.c.l.b16 %v819
      %v824 = vpack.c.b16 %v823, %v822
      %v827 = vsel %vm561, %v816, 0
      %829 = vmatprep.subr.bf16.mxu0 0
      %830 = vmatpush1.bf16.msra.mxu0 %v824
      %831 = vmatprep.subr.bf16.mxu0 0
      %832 = vmatpush1.bf16.msra.mxu0 0
      %833 = vmatprep.subr.bf16.mxu0 0
      %834 = vmatpush1.bf16.msra.mxu0 0
      %835 = vmatprep.subr.bf16.mxu0 0
      %836 = vmatpush1.bf16.msra.mxu0 0
      %837 = vmatprep.subr.bf16.mxu0 0
      %838 = vmatpush1.bf16.msra.mxu0 0
      %839 = vmatprep.subr.bf16.mxu0 0
      %840 = vmatpush1.bf16.msra.mxu0 0
      %841 = vmatprep.subr.bf16.mxu0 0
      %842 = vmatpush1.bf16.msra.mxu0 0
      %843 = vmatprep.subr.bf16.mxu0 0
      %844 = vmatpush1.bf16.msra.mxu0 0
      %845 = vmatprep.subr.bf16.mxu0 0
      %846 = vmatpush1.bf16.msra.mxu0 0
      %847 = vmatprep.subr.bf16.mxu0 0
      %848 = vmatpush1.bf16.msra.mxu0 0
      %849 = vmatprep.subr.bf16.mxu0 0
      %850 = vmatpush1.bf16.msra.mxu0 0
      %851 = vmatprep.subr.bf16.mxu0 0
      %852 = vmatpush1.bf16.msra.mxu0 0
      %853 = vmatprep.subr.bf16.mxu0 0
      %854 = vmatpush1.bf16.msra.mxu0 0
      %855 = vmatprep.subr.bf16.mxu0 0
      %856 = vmatpush1.bf16.msra.mxu0 0
      %857 = vmatprep.subr.bf16.mxu0 0
      %858 = vmatpush1.bf16.msra.mxu0 0
      %859 = vmatprep.subr.bf16.mxu0 0
      %860 = vmatpush1.bf16.msra.mxu0 0
      %861 = vmatprep.mubr.bf16.mxu0 0
      %862 = vmatmul.mubr.bf16.gmra.mrb[0].mxu0 %v827
      %v863 = vpop.f32.mrb[0].mxu0
      %v864 = vadd.f32 0.0, %v863
      %v865 = vpop.f32.mrb[0].mxu0
      %v866 = vpop.f32.mrb[0].mxu0
      %v867 = vadd.f32 0.0, %v866
      %v868 = vpop.f32.mrb[0].mxu0
      %869 = vdwg.mxu0
      %v870 = vadd.f32 %v762, %v864
      %v871 = vadd.f32 %v763, %v867
      %s872 = scalar_lea.vmem %s3, 32
      %v873 = vld [vmem:[%s872] sm:$0xf]
      %v874 = vld [vmem:[%s872 + $0x4] sm:$0xf]
      %v877 = vunpack.c.l.b16 %v873
      %v878 = vunpack.c.l.b16 %v874
      %v879 = vpack.c.b16 %v878, %v877
      %v881 = vsel %vm451, %v879, 0
      %883 = vmatprep.subr.bf16.mxu0 0
      %884 = vmatpush1.bf16.msra.mxu0 %v440
      %885 = vmatprep.subr.bf16.mxu0 0
      %886 = vmatpush1.bf16.msra.mxu0 %v441
      %887 = vmatprep.subr.bf16.mxu0 0
      %888 = vmatpush1.bf16.msra.mxu0 %v442
      %889 = vmatprep.subr.bf16.mxu0 0
      %890 = vmatpush1.bf16.msra.mxu0 %v443
      %891 = vmatprep.subr.bf16.mxu0 0
      %892 = vmatpush1.bf16.msra.mxu0 0
      %893 = vmatprep.subr.bf16.mxu0 0
      %894 = vmatpush1.bf16.msra.mxu0 0
      %895 = vmatprep.subr.bf16.mxu0 0
      %896 = vmatpush1.bf16.msra.mxu0 0
      %897 = vmatprep.subr.bf16.mxu0 0
      %898 = vmatpush1.bf16.msra.mxu0 0
      %899 = vmatprep.subr.bf16.mxu0 0
      %900 = vmatpush1.bf16.msra.mxu0 0
      %901 = vmatprep.subr.bf16.mxu0 0
      %902 = vmatpush1.bf16.msra.mxu0 0
      %903 = vmatprep.subr.bf16.mxu0 0
      %904 = vmatpush1.bf16.msra.mxu0 0
      %905 = vmatprep.subr.bf16.mxu0 0
      %906 = vmatpush1.bf16.msra.mxu0 0
      %907 = vmatprep.subr.bf16.mxu0 0
      %908 = vmatpush1.bf16.msra.mxu0 0
      %909 = vmatprep.subr.bf16.mxu0 0
      %910 = vmatpush1.bf16.msra.mxu0 0
      %911 = vmatprep.subr.bf16.mxu0 0
      %912 = vmatpush1.bf16.msra.mxu0 0
      %913 = vmatprep.subr.bf16.mxu0 0
      %914 = vmatpush1.bf16.msra.mxu0 0
      %915 = vmatprep.mubr.bf16.mxu0 0
      %916 = vmatmul.mubr.bf16.gmra.mrb[0].mxu0 %v881
      %v917 = vpop.f32.mrb[0].mxu0
      %v918 = vadd.f32 0.0, %v917
      %v919 = vpop.f32.mrb[0].mxu0
      %v920 = vpop.f32.mrb[0].mxu0
      %v921 = vadd.f32 0.0, %v920
      %v922 = vpop.f32.mrb[0].mxu0
      %923 = vdwg.mxu0
      %v924 = vpack.c.bf16 %v921, %v918
      %s925 = scalar_lea.vmem %s4, 32
      %v926 = vld [vmem:[%s925] sm:$0xf]
      %v927 = vld [vmem:[%s925 + $0x4] sm:$0xf]
      %v930 = vunpack.c.l.b16 %v926
      %v931 = vunpack.c.l.b16 %v927
      %v932 = vpack.c.b16 %v931, %v930
      %v935 = vsel %vm561, %v924, 0
      %937 = vmatprep.subr.bf16.mxu0 0
      %938 = vmatpush1.bf16.msra.mxu0 %v932
      %939 = vmatprep.subr.bf16.mxu0 0
      %940 = vmatpush1.bf16.msra.mxu0 0
      %941 = vmatprep.subr.bf16.mxu0 0
      %942 = vmatpush1.bf16.msra.mxu0 0
      %943 = vmatprep.subr.bf16.mxu0 0
      %944 = vmatpush1.bf16.msra.mxu0 0
      %945 = vmatprep.subr.bf16.mxu0 0
      %946 = vmatpush1.bf16.msra.mxu0 0
      %947 = vmatprep.subr.bf16.mxu0 0
      %948 = vmatpush1.bf16.msra.mxu0 0
      %949 = vmatprep.subr.bf16.mxu0 0
      %950 = vmatpush1.bf16.msra.mxu0 0
      %951 = vmatprep.subr.bf16.mxu0 0
      %952 = vmatpush1.bf16.msra.mxu0 0
      %953 = vmatprep.subr.bf16.mxu0 0
      %954 = vmatpush1.bf16.msra.mxu0 0
      %955 = vmatprep.subr.bf16.mxu0 0
      %956 = vmatpush1.bf16.msra.mxu0 0
      %957 = vmatprep.subr.bf16.mxu0 0
      %958 = vmatpush1.bf16.msra.mxu0 0
      %959 = vmatprep.subr.bf16.mxu0 0
      %960 = vmatpush1.bf16.msra.mxu0 0
      %961 = vmatprep.subr.bf16.mxu0 0
      %962 = vmatpush1.bf16.msra.mxu0 0
      %963 = vmatprep.subr.bf16.mxu0 0
      %964 = vmatpush1.bf16.msra.mxu0 0
      %965 = vmatprep.subr.bf16.mxu0 0
      %966 = vmatpush1.bf16.msra.mxu0 0
      %967 = vmatprep.subr.bf16.mxu0 0
      %968 = vmatpush1.bf16.msra.mxu0 0
      %969 = vmatprep.mubr.bf16.mxu0 0
      %970 = vmatmul.mubr.bf16.gmra.mrb[0].mxu0 %v935
      %v971 = vpop.f32.mrb[0].mxu0
      %v972 = vadd.f32 0.0, %v971
      %v973 = vpop.f32.mrb[0].mxu0
      %v974 = vpop.f32.mrb[0].mxu0
      %v975 = vadd.f32 0.0, %v974
      %v976 = vpop.f32.mrb[0].mxu0
      %977 = vdwg.mxu0
      %v978 = vadd.f32 %v870, %v972
      %v979 = vadd.f32 %v871, %v975
      %s980 = scalar_lea.vmem %s3, 40
      %v981 = vld [vmem:[%s980] sm:$0xf]
      %v982 = vld [vmem:[%s980 + $0x4] sm:$0xf]
      %v985 = vunpack.c.l.b16 %v981
      %v986 = vunpack.c.l.b16 %v982
      %v987 = vpack.c.b16 %v986, %v985
      %v989 = vsel %vm451, %v987, 0
      %991 = vmatprep.subr.bf16.mxu0 0
      %992 = vmatpush1.bf16.msra.mxu0 %v440
      %993 = vmatprep.subr.bf16.mxu0 0
      %994 = vmatpush1.bf16.msra.mxu0 %v441
      %995 = vmatprep.subr.bf16.mxu0 0
      %996 = vmatpush1.bf16.msra.mxu0 %v442
      %997 = vmatprep.subr.bf16.mxu0 0
      %998 = vmatpush1.bf16.msra.mxu0 %v443
      %999 = vmatprep.subr.bf16.mxu0 0
      %1000 = vmatpush1.bf16.msra.mxu0 0
      %1001 = vmatprep.subr.bf16.mxu0 0
      %1002 = vmatpush1.bf16.msra.mxu0 0
      %1003 = vmatprep.subr.bf16.mxu0 0
      %1004 = vmatpush1.bf16.msra.mxu0 0
      %1005 = vmatprep.subr.bf16.mxu0 0
      %1006 = vmatpush1.bf16.msra.mxu0 0
      %1007 = vmatprep.subr.bf16.mxu0 0
      %1008 = vmatpush1.bf16.msra.mxu0 0
      %1009 = vmatprep.subr.bf16.mxu0 0
      %1010 = vmatpush1.bf16.msra.mxu0 0
      %1011 = vmatprep.subr.bf16.mxu0 0
      %1012 = vmatpush1.bf16.msra.mxu0 0
      %1013 = vmatprep.subr.bf16.mxu0 0
      %1014 = vmatpush1.bf16.msra.mxu0 0
      %1015 = vmatprep.subr.bf16.mxu0 0
      %1016 = vmatpush1.bf16.msra.mxu0 0
      %1017 = vmatprep.subr.bf16.mxu0 0
      %1018 = vmatpush1.bf16.msra.mxu0 0
      %1019 = vmatprep.subr.bf16.mxu0 0
      %1020 = vmatpush1.bf16.msra.mxu0 0
      %1021 = vmatprep.subr.bf16.mxu0 0
      %1022 = vmatpush1.bf16.msra.mxu0 0
      %1023 = vmatprep.mubr.bf16.mxu0 0
      %1024 = vmatmul.mubr.bf16.gmra.mrb[0].mxu0 %v989
      %v1025 = vpop.f32.mrb[0].mxu0
      %v1026 = vadd.f32 0.0, %v1025
      %v1027 = vpop.f32.mrb[0].mxu0
      %v1028 = vpop.f32.mrb[0].mxu0
      %v1029 = vadd.f32 0.0, %v1028
      %v1030 = vpop.f32.mrb[0].mxu0
      %1031 = vdwg.mxu0
      %v1032 = vpack.c.bf16 %v1029, %v1026
      %s1033 = scalar_lea.vmem %s4, 40
      %v1034 = vld [vmem:[%s1033] sm:$0xf]
      %v1035 = vld [vmem:[%s1033 + $0x4] sm:$0xf]
      %v1038 = vunpack.c.l.b16 %v1034
      %v1039 = vunpack.c.l.b16 %v1035
      %v1040 = vpack.c.b16 %v1039, %v1038
      %v1043 = vsel %vm561, %v1032, 0
      %1045 = vmatprep.subr.bf16.mxu0 0
      %1046 = vmatpush1.bf16.msra.mxu0 %v1040
      %1047 = vmatprep.subr.bf16.mxu0 0
      %1048 = vmatpush1.bf16.msra.mxu0 0
      %1049 = vmatprep.subr.bf16.mxu0 0
      %1050 = vmatpush1.bf16.msra.mxu0 0
      %1051 = vmatprep.subr.bf16.mxu0 0
      %1052 = vmatpush1.bf16.msra.mxu0 0
      %1053 = vmatprep.subr.bf16.mxu0 0
      %1054 = vmatpush1.bf16.msra.mxu0 0
      %1055 = vmatprep.subr.bf16.mxu0 0
      %1056 = vmatpush1.bf16.msra.mxu0 0
      %1057 = vmatprep.subr.bf16.mxu0 0
      %1058 = vmatpush1.bf16.msra.mxu0 0
      %1059 = vmatprep.subr.bf16.mxu0 0
      %1060 = vmatpush1.bf16.msra.mxu0 0
      %1061 = vmatprep.subr.bf16.mxu0 0
      %1062 = vmatpush1.bf16.msra.mxu0 0
      %1063 = vmatprep.subr.bf16.mxu0 0
      %1064 = vmatpush1.bf16.msra.mxu0 0
      %1065 = vmatprep.subr.bf16.mxu0 0
      %1066 = vmatpush1.bf16.msra.mxu0 0
      %1067 = vmatprep.subr.bf16.mxu0 0
      %1068 = vmatpush1.bf16.msra.mxu0 0
      %1069 = vmatprep.subr.bf16.mxu0 0
      %1070 = vmatpush1.bf16.msra.mxu0 0
      %1071 = vmatprep.subr.bf16.mxu0 0
      %1072 = vmatpush1.bf16.msra.mxu0 0
      %1073 = vmatprep.subr.bf16.mxu0 0
      %1074 = vmatpush1.bf16.msra.mxu0 0
      %1075 = vmatprep.subr.bf16.mxu0 0
      %1076 = vmatpush1.bf16.msra.mxu0 0
      %1077 = vmatprep.mubr.bf16.mxu0 0
      %1078 = vmatmul.mubr.bf16.gmra.mrb[0].mxu0 %v1043
      %v1079 = vpop.f32.mrb[0].mxu0
      %v1080 = vadd.f32 0.0, %v1079
      %v1081 = vpop.f32.mrb[0].mxu0
      %v1082 = vpop.f32.mrb[0].mxu0
      %v1083 = vadd.f32 0.0, %v1082
      %v1084 = vpop.f32.mrb[0].mxu0
      %1085 = vdwg.mxu0
      %v1086 = vadd.f32 %v978, %v1080
      %v1087 = vadd.f32 %v979, %v1083
      %s1088 = scalar_lea.vmem %s3, 48
      %v1089 = vld [vmem:[%s1088] sm:$0xf]
      %v1090 = vld [vmem:[%s1088 + $0x4] sm:$0xf]
      %v1093 = vunpack.c.l.b16 %v1089
      %v1094 = vunpack.c.l.b16 %v1090
      %v1095 = vpack.c.b16 %v1094, %v1093
      %v1097 = vsel %vm451, %v1095, 0
      %1099 = vmatprep.subr.bf16.mxu0 0
      %1100 = vmatpush1.bf16.msra.mxu0 %v440
      %1101 = vmatprep.subr.bf16.mxu0 0
      %1102 = vmatpush1.bf16.msra.mxu0 %v441
      %1103 = vmatprep.subr.bf16.mxu0 0
      %1104 = vmatpush1.bf16.msra.mxu0 %v442
      %1105 = vmatprep.subr.bf16.mxu0 0
      %1106 = vmatpush1.bf16.msra.mxu0 %v443
      %1107 = vmatprep.subr.bf16.mxu0 0
      %1108 = vmatpush1.bf16.msra.mxu0 0
      %1109 = vmatprep.subr.bf16.mxu0 0
      %1110 = vmatpush1.bf16.msra.mxu0 0
      %1111 = vmatprep.subr.bf16.mxu0 0
      %1112 = vmatpush1.bf16.msra.mxu0 0
      %1113 = vmatprep.subr.bf16.mxu0 0
      %1114 = vmatpush1.bf16.msra.mxu0 0
      %1115 = vmatprep.subr.bf16.mxu0 0
      %1116 = vmatpush1.bf16.msra.mxu0 0
      %1117 = vmatprep.subr.bf16.mxu0 0
      %1118 = vmatpush1.bf16.msra.mxu0 0
      %1119 = vmatprep.subr.bf16.mxu0 0
      %1120 = vmatpush1.bf16.msra.mxu0 0
      %1121 = vmatprep.subr.bf16.mxu0 0
      %1122 = vmatpush1.bf16.msra.mxu0 0
      %1123 = vmatprep.subr.bf16.mxu0 0
      %1124 = vmatpush1.bf16.msra.mxu0 0
      %1125 = vmatprep.subr.bf16.mxu0 0
      %1126 = vmatpush1.bf16.msra.mxu0 0
      %1127 = vmatprep.subr.bf16.mxu0 0
      %1128 = vmatpush1.bf16.msra.mxu0 0
      %1129 = vmatprep.subr.bf16.mxu0 0
      %1130 = vmatpush1.bf16.msra.mxu0 0
      %1131 = vmatprep.mubr.bf16.mxu0 0
      %1132 = vmatmul.mubr.bf16.gmra.mrb[0].mxu0 %v1097
      %v1133 = vpop.f32.mrb[0].mxu0
      %v1134 = vadd.f32 0.0, %v1133
      %v1135 = vpop.f32.mrb[0].mxu0
      %v1136 = vpop.f32.mrb[0].mxu0
      %v1137 = vadd.f32 0.0, %v1136
      %v1138 = vpop.f32.mrb[0].mxu0
      %1139 = vdwg.mxu0
      %v1140 = vpack.c.bf16 %v1137, %v1134
      %s1141 = scalar_lea.vmem %s4, 48
      %v1142 = vld [vmem:[%s1141] sm:$0xf]
      %v1143 = vld [vmem:[%s1141 + $0x4] sm:$0xf]
      %v1146 = vunpack.c.l.b16 %v1142
      %v1147 = vunpack.c.l.b16 %v1143
      %v1148 = vpack.c.b16 %v1147, %v1146
      %v1151 = vsel %vm561, %v1140, 0
      %1153 = vmatprep.subr.bf16.mxu0 0
      %1154 = vmatpush1.bf16.msra.mxu0 %v1148
      %1155 = vmatprep.subr.bf16.mxu0 0
      %1156 = vmatpush1.bf16.msra.mxu0 0
      %1157 = vmatprep.subr.bf16.mxu0 0
      %1158 = vmatpush1.bf16.msra.mxu0 0
      %1159 = vmatprep.subr.bf16.mxu0 0
      %1160 = vmatpush1.bf16.msra.mxu0 0
      %1161 = vmatprep.subr.bf16.mxu0 0
      %1162 = vmatpush1.bf16.msra.mxu0 0
      %1163 = vmatprep.subr.bf16.mxu0 0
      %1164 = vmatpush1.bf16.msra.mxu0 0
      %1165 = vmatprep.subr.bf16.mxu0 0
      %1166 = vmatpush1.bf16.msra.mxu0 0
      %1167 = vmatprep.subr.bf16.mxu0 0
      %1168 = vmatpush1.bf16.msra.mxu0 0
      %1169 = vmatprep.subr.bf16.mxu0 0
      %1170 = vmatpush1.bf16.msra.mxu0 0
      %1171 = vmatprep.subr.bf16.mxu0 0
      %1172 = vmatpush1.bf16.msra.mxu0 0
      %1173 = vmatprep.subr.bf16.mxu0 0
      %1174 = vmatpush1.bf16.msra.mxu0 0
      %1175 = vmatprep.subr.bf16.mxu0 0
      %1176 = vmatpush1.bf16.msra.mxu0 0
      %1177 = vmatprep.subr.bf16.mxu0 0
      %1178 = vmatpush1.bf16.msra.mxu0 0
      %1179 = vmatprep.subr.bf16.mxu0 0
      %1180 = vmatpush1.bf16.msra.mxu0 0
      %1181 = vmatprep.subr.bf16.mxu0 0
      %1182 = vmatpush1.bf16.msra.mxu0 0
      %1183 = vmatprep.subr.bf16.mxu0 0
      %1184 = vmatpush1.bf16.msra.mxu0 0
      %1185 = vmatprep.mubr.bf16.mxu0 0
      %1186 = vmatmul.mubr.bf16.gmra.mrb[0].mxu0 %v1151
      %v1187 = vpop.f32.mrb[0].mxu0
      %v1188 = vadd.f32 0.0, %v1187
      %v1189 = vpop.f32.mrb[0].mxu0
      %v1190 = vpop.f32.mrb[0].mxu0
      %v1191 = vadd.f32 0.0, %v1190
      %v1192 = vpop.f32.mrb[0].mxu0
      %1193 = vdwg.mxu0
      %v1194 = vadd.f32 %v1086, %v1188
      %v1195 = vadd.f32 %v1087, %v1191
      %s1196 = scalar_lea.vmem %s3, 56
      %v1197 = vld [vmem:[%s1196] sm:$0xf]
      %v1198 = vld [vmem:[%s1196 + $0x4] sm:$0xf]
      %v1201 = vunpack.c.l.b16 %v1197
      %v1202 = vunpack.c.l.b16 %v1198
      %v1203 = vpack.c.b16 %v1202, %v1201
      %v1205 = vsel %vm451, %v1203, 0
      %1207 = vmatprep.subr.bf16.mxu0 0
      %1208 = vmatpush1.bf16.msra.mxu0 %v440
      %1209 = vmatprep.subr.bf16.mxu0 0
      %1210 = vmatpush1.bf16.msra.mxu0 %v441
      %1211 = vmatprep.subr.bf16.mxu0 0
      %1212 = vmatpush1.bf16.msra.mxu0 %v442
      %1213 = vmatprep.subr.bf16.mxu0 0
      %1214 = vmatpush1.bf16.msra.mxu0 %v443
      %1215 = vmatprep.subr.bf16.mxu0 0
      %1216 = vmatpush1.bf16.msra.mxu0 0
      %1217 = vmatprep.subr.bf16.mxu0 0
      %1218 = vmatpush1.bf16.msra.mxu0 0
      %1219 = vmatprep.subr.bf16.mxu0 0
      %1220 = vmatpush1.bf16.msra.mxu0 0
      %1221 = vmatprep.subr.bf16.mxu0 0
      %1222 = vmatpush1.bf16.msra.mxu0 0
      %1223 = vmatprep.subr.bf16.mxu0 0
      %1224 = vmatpush1.bf16.msra.mxu0 0
      %1225 = vmatprep.subr.bf16.mxu0 0
      %1226 = vmatpush1.bf16.msra.mxu0 0
      %1227 = vmatprep.subr.bf16.mxu0 0
      %1228 = vmatpush1.bf16.msra.mxu0 0
      %1229 = vmatprep.subr.bf16.mxu0 0
      %1230 = vmatpush1.bf16.msra.mxu0 0
      %1231 = vmatprep.subr.bf16.mxu0 0
      %1232 = vmatpush1.bf16.msra.mxu0 0
      %1233 = vmatprep.subr.bf16.mxu0 0
      %1234 = vmatpush1.bf16.msra.mxu0 0
      %1235 = vmatprep.subr.bf16.mxu0 0
      %1236 = vmatpush1.bf16.msra.mxu0 0
      %1237 = vmatprep.subr.bf16.mxu0 0
      %1238 = vmatpush1.bf16.msra.mxu0 0
      %1239 = vmatprep.mubr.bf16.mxu0 0
      %1240 = vmatmul.mubr.bf16.gmra.mrb[0].mxu0 %v1205
      %v1241 = vpop.f32.mrb[0].mxu0
      %v1242 = vadd.f32 0.0, %v1241
      %v1243 = vpop.f32.mrb[0].mxu0
      %v1244 = vpop.f32.mrb[0].mxu0
      %v1245 = vadd.f32 0.0, %v1244
      %v1246 = vpop.f32.mrb[0].mxu0
      %1247 = vdwg.mxu0
      %v1248 = vpack.c.bf16 %v1245, %v1242
      %s1249 = scalar_lea.vmem %s4, 56
      %v1250 = vld [vmem:[%s1249] sm:$0xf]
      %v1251 = vld [vmem:[%s1249 + $0x4] sm:$0xf]
      %v1254 = vunpack.c.l.b16 %v1250
      %v1255 = vunpack.c.l.b16 %v1251
      %v1256 = vpack.c.b16 %v1255, %v1254
      %v1259 = vsel %vm561, %v1248, 0
      %1261 = vmatprep.subr.bf16.mxu0 0
      %1262 = vmatpush1.bf16.msra.mxu0 %v1256
      %1263 = vmatprep.subr.bf16.mxu0 0
      %1264 = vmatpush1.bf16.msra.mxu0 0
      %1265 = vmatprep.subr.bf16.mxu0 0
      %1266 = vmatpush1.bf16.msra.mxu0 0
      %1267 = vmatprep.subr.bf16.mxu0 0
      %1268 = vmatpush1.bf16.msra.mxu0 0
      %1269 = vmatprep.subr.bf16.mxu0 0
      %1270 = vmatpush1.bf16.msra.mxu0 0
      %1271 = vmatprep.subr.bf16.mxu0 0
      %1272 = vmatpush1.bf16.msra.mxu0 0
      %1273 = vmatprep.subr.bf16.mxu0 0
      %1274 = vmatpush1.bf16.msra.mxu0 0
      %1275 = vmatprep.subr.bf16.mxu0 0
      %1276 = vmatpush1.bf16.msra.mxu0 0
      %1277 = vmatprep.subr.bf16.mxu0 0
      %1278 = vmatpush1.bf16.msra.mxu0 0
      %1279 = vmatprep.subr.bf16.mxu0 0
      %1280 = vmatpush1.bf16.msra.mxu0 0
      %1281 = vmatprep.subr.bf16.mxu0 0
      %1282 = vmatpush1.bf16.msra.mxu0 0
      %1283 = vmatprep.subr.bf16.mxu0 0
      %1284 = vmatpush1.bf16.msra.mxu0 0
      %1285 = vmatprep.subr.bf16.mxu0 0
      %1286 = vmatpush1.bf16.msra.mxu0 0
      %1287 = vmatprep.subr.bf16.mxu0 0
      %1288 = vmatpush1.bf16.msra.mxu0 0
      %1289 = vmatprep.subr.bf16.mxu0 0
      %1290 = vmatpush1.bf16.msra.mxu0 0
      %1291 = vmatprep.subr.bf16.mxu0 0
      %1292 = vmatpush1.bf16.msra.mxu0 0
      %1293 = vmatprep.mubr.bf16.mxu0 0
      %1294 = vmatmul.mubr.bf16.gmra.mrb[0].mxu0 %v1259
      %v1295 = vpop.f32.mrb[0].mxu0
      %v1296 = vadd.f32 0.0, %v1295
      %v1297 = vpop.f32.mrb[0].mxu0
      %v1298 = vpop.f32.mrb[0].mxu0
      %v1299 = vadd.f32 0.0, %v1298
      %v1300 = vpop.f32.mrb[0].mxu0
      %1301 = vdwg.mxu0
      %v1302 = vadd.f32 %v1194, %v1296
      %v1303 = vadd.f32 %v1195, %v1299
      %s1304 = scalar_lea.vmem %s3, 64
      %v1305 = vld [vmem:[%s1304] sm:$0xf]
      %v1306 = vld [vmem:[%s1304 + $0x4] sm:$0xf]
      %v1309 = vunpack.c.l.b16 %v1305
      %v1310 = vunpack.c.l.b16 %v1306
      %v1311 = vpack.c.b16 %v1310, %v1309
      %v1313 = vsel %vm451, %v1311, 0
      %1315 = vmatprep.subr.bf16.mxu0 0
      %1316 = vmatpush1.bf16.msra.mxu0 %v440
      %1317 = vmatprep.subr.bf16.mxu0 0
      %1318 = vmatpush1.bf16.msra.mxu0 %v441
      %1319 = vmatprep.subr.bf16.mxu0 0
      %1320 = vmatpush1.bf16.msra.mxu0 %v442
      %1321 = vmatprep.subr.bf16.mxu0 0
      %1322 = vmatpush1.bf16.msra.mxu0 %v443
      %1323 = vmatprep.subr.bf16.mxu0 0
      %1324 = vmatpush1.bf16.msra.mxu0 0
      %1325 = vmatprep.subr.bf16.mxu0 0
      %1326 = vmatpush1.bf16.msra.mxu0 0
      %1327 = vmatprep.subr.bf16.mxu0 0
      %1328 = vmatpush1.bf16.msra.mxu0 0
      %1329 = vmatprep.subr.bf16.mxu0 0
      %1330 = vmatpush1.bf16.msra.mxu0 0
      %1331 = vmatprep.subr.bf16.mxu0 0
      %1332 = vmatpush1.bf16.msra.mxu0 0
      %1333 = vmatprep.subr.bf16.mxu0 0
      %1334 = vmatpush1.bf16.msra.mxu0 0
      %1335 = vmatprep.subr.bf16.mxu0 0
      %1336 = vmatpush1.bf16.msra.mxu0 0
      %1337 = vmatprep.subr.bf16.mxu0 0
      %1338 = vmatpush1.bf16.msra.mxu0 0
      %1339 = vmatprep.subr.bf16.mxu0 0
      %1340 = vmatpush1.bf16.msra.mxu0 0
      %1341 = vmatprep.subr.bf16.mxu0 0
      %1342 = vmatpush1.bf16.msra.mxu0 0
      %1343 = vmatprep.subr.bf16.mxu0 0
      %1344 = vmatpush1.bf16.msra.mxu0 0
      %1345 = vmatprep.subr.bf16.mxu0 0
      %1346 = vmatpush1.bf16.msra.mxu0 0
      %1347 = vmatprep.mubr.bf16.mxu0 0
      %1348 = vmatmul.mubr.bf16.gmra.mrb[0].mxu0 %v1313
      %v1349 = vpop.f32.mrb[0].mxu0
      %v1350 = vadd.f32 0.0, %v1349
      %v1351 = vpop.f32.mrb[0].mxu0
      %v1352 = vpop.f32.mrb[0].mxu0
      %v1353 = vadd.f32 0.0, %v1352
      %v1354 = vpop.f32.mrb[0].mxu0
      %1355 = vdwg.mxu0
      %v1356 = vpack.c.bf16 %v1353, %v1350
      %s1357 = scalar_lea.vmem %s4, 64
      %v1358 = vld [vmem:[%s1357] sm:$0xf]
      %v1359 = vld [vmem:[%s1357 + $0x4] sm:$0xf]
      %v1362 = vunpack.c.l.b16 %v1358
      %v1363 = vunpack.c.l.b16 %v1359
      %v1364 = vpack.c.b16 %v1363, %v1362
      %v1367 = vsel %vm561, %v1356, 0
      %1369 = vmatprep.subr.bf16.mxu0 0
      %1370 = vmatpush1.bf16.msra.mxu0 %v1364
      %1371 = vmatprep.subr.bf16.mxu0 0
      %1372 = vmatpush1.bf16.msra.mxu0 0
      %1373 = vmatprep.subr.bf16.mxu0 0
      %1374 = vmatpush1.bf16.msra.mxu0 0
      %1375 = vmatprep.subr.bf16.mxu0 0
      %1376 = vmatpush1.bf16.msra.mxu0 0
      %1377 = vmatprep.subr.bf16.mxu0 0
      %1378 = vmatpush1.bf16.msra.mxu0 0
      %1379 = vmatprep.subr.bf16.mxu0 0
      %1380 = vmatpush1.bf16.msra.mxu0 0
      %1381 = vmatprep.subr.bf16.mxu0 0
      %1382 = vmatpush1.bf16.msra.mxu0 0
      %1383 = vmatprep.subr.bf16.mxu0 0
      %1384 = vmatpush1.bf16.msra.mxu0 0
      %1385 = vmatprep.subr.bf16.mxu0 0
      %1386 = vmatpush1.bf16.msra.mxu0 0
      %1387 = vmatprep.subr.bf16.mxu0 0
      %1388 = vmatpush1.bf16.msra.mxu0 0
      %1389 = vmatprep.subr.bf16.mxu0 0
      %1390 = vmatpush1.bf16.msra.mxu0 0
      %1391 = vmatprep.subr.bf16.mxu0 0
      %1392 = vmatpush1.bf16.msra.mxu0 0
      %1393 = vmatprep.subr.bf16.mxu0 0
      %1394 = vmatpush1.bf16.msra.mxu0 0
      %1395 = vmatprep.subr.bf16.mxu0 0
      %1396 = vmatpush1.bf16.msra.mxu0 0
      %1397 = vmatprep.subr.bf16.mxu0 0
      %1398 = vmatpush1.bf16.msra.mxu0 0
      %1399 = vmatprep.subr.bf16.mxu0 0
      %1400 = vmatpush1.bf16.msra.mxu0 0
      %1401 = vmatprep.mubr.bf16.mxu0 0
      %1402 = vmatmul.mubr.bf16.gmra.mrb[0].mxu0 %v1367
      %v1403 = vpop.f32.mrb[0].mxu0
      %v1404 = vadd.f32 0.0, %v1403
      %v1405 = vpop.f32.mrb[0].mxu0
      %v1406 = vpop.f32.mrb[0].mxu0
      %v1407 = vadd.f32 0.0, %v1406
      %v1408 = vpop.f32.mrb[0].mxu0
      %1409 = vdwg.mxu0
      %v1410 = vadd.f32 %v1302, %v1404
      %v1411 = vadd.f32 %v1303, %v1407
      %v1412 = vld [vmem:[%s5] sm:$0x1]
      %v1414 = vlaneseq
      %v1415 = vshrl.u32 %v1414, 7
      %v1416 = vsub.s32 0, %v1415
      %v1417 = vrot.slane %v1412, %v1416
      %v1419 = vadd.f32 %v1410, %v1417
      %v1420 = vadd.f32 %v1411, %v1417
      %v1421 = vmax.f32 %v1419, 0.0
      %v1422 = vmax.f32 %v1420, 0.0
      %v1423 = vpack.c.bf16 %v1421, %v1421
      %v1424 = vld [vmem:[%s6] sm:$0xf]
      %v1425 = vld [vmem:[%s6 + $0x4] sm:$0xf]
      %v1426 = vld [vmem:[%s6 + $0x8] sm:$0xf]
      %v1427 = vld [vmem:[%s6 + $0xc] sm:$0xf]
      %s1428 = scalar_lea.vmem %s6, 16
      %v1429 = vld [vmem:[%s1428] sm:$0xf]
      %v1430 = vld [vmem:[%s1428 + $0x4] sm:$0xf]
      %v1431 = vld [vmem:[%s1428 + $0x8] sm:$0xf]
      %v1432 = vld [vmem:[%s1428 + $0xc] sm:$0xf]
      %v1434 = vshrl.u32 %v1423, 16
      %v1440 = vunpack.c.l.b16 %v1429
      %v1441 = vunpack.c.l.b16 %v1430
      %v1442 = vunpack.c.l.b16 %v1431
      %v1443 = vunpack.c.l.b16 %v1432
      %v1444 = vpack.c.b16 %v1441, %v1440
      %v1445 = vpack.c.b16 %v1443, %v1442
      %v1449 = vsel %vm354, %v1434, 0
      %1451 = vmatprep.subr.bf16.mxu0 0
      %1452 = vmatpush1.bf16.msra.mxu0 %v1444
      %1453 = vmatprep.subr.bf16.mxu0 0
      %1454 = vmatpush1.bf16.msra.mxu0 %v1445
      %1455 = vmatprep.subr.bf16.mxu0 0
      %1456 = vmatpush1.bf16.msra.mxu0 0
      %1457 = vmatprep.subr.bf16.mxu0 0
      %1458 = vmatpush1.bf16.msra.mxu0 0
      %1459 = vmatprep.subr.bf16.mxu0 0
      %1460 = vmatpush1.bf16.msra.mxu0 0
      %1461 = vmatprep.subr.bf16.mxu0 0
      %1462 = vmatpush1.bf16.msra.mxu0 0
      %1463 = vmatprep.subr.bf16.mxu0 0
      %1464 = vmatpush1.bf16.msra.mxu0 0
      %1465 = vmatprep.subr.bf16.mxu0 0
      %1466 = vmatpush1.bf16.msra.mxu0 0
      %1467 = vmatprep.subr.bf16.mxu0 0
      %1468 = vmatpush1.bf16.msra.mxu0 0
      %1469 = vmatprep.subr.bf16.mxu0 0
      %1470 = vmatpush1.bf16.msra.mxu0 0
      %1471 = vmatprep.subr.bf16.mxu0 0
      %1472 = vmatpush1.bf16.msra.mxu0 0
      %1473 = vmatprep.subr.bf16.mxu0 0
      %1474 = vmatpush1.bf16.msra.mxu0 0
      %1475 = vmatprep.subr.bf16.mxu0 0
      %1476 = vmatpush1.bf16.msra.mxu0 0
      %1477 = vmatprep.subr.bf16.mxu0 0
      %1478 = vmatpush1.bf16.msra.mxu0 0
      %1479 = vmatprep.subr.bf16.mxu0 0
      %1480 = vmatpush1.bf16.msra.mxu0 0
      %1481 = vmatprep.subr.bf16.mxu0 0
      %1482 = vmatpush1.bf16.msra.mxu0 0
      %1483 = vmatprep.mubr.bf16.mxu0 0
      %1484 = vmatmul.mubr.bf16.gmra.mrb[0].mxu0 %v1449
      %v1485 = vpop.f32.mrb[0].mxu0
      %v1486 = vadd.f32 0.0, %v1485
      %v1487 = vpop.f32.mrb[0].mxu0
      %v1488 = vpop.f32.mrb[0].mxu0
      %v1489 = vpop.f32.mrb[0].mxu0
      %1490 = vdwg.mxu0
      %v1495 = vunpack.c.l.b16 %v1424
      %v1496 = vunpack.c.l.b16 %v1425
      %v1497 = vunpack.c.l.b16 %v1426
      %v1498 = vunpack.c.l.b16 %v1427
      %v1499 = vpack.c.b16 %v1496, %v1495
      %v1500 = vpack.c.b16 %v1498, %v1497
      %v1503 = vsel %vm354, %v1423, 0
      %1505 = vmatprep.subr.bf16.mxu0 0
      %1506 = vmatpush1.bf16.msra.mxu0 %v1499
      %1507 = vmatprep.subr.bf16.mxu0 0
      %1508 = vmatpush1.bf16.msra.mxu0 %v1500
      %1509 = vmatprep.subr.bf16.mxu0 0
      %1510 = vmatpush1.bf16.msra.mxu0 0
      %1511 = vmatprep.subr.bf16.mxu0 0
      %1512 = vmatpush1.bf16.msra.mxu0 0
      %1513 = vmatprep.subr.bf16.mxu0 0
      %1514 = vmatpush1.bf16.msra.mxu0 0
      %1515 = vmatprep.subr.bf16.mxu0 0
      %1516 = vmatpush1.bf16.msra.mxu0 0
      %1517 = vmatprep.subr.bf16.mxu0 0
      %1518 = vmatpush1.bf16.msra.mxu0 0
      %1519 = vmatprep.subr.bf16.mxu0 0
      %1520 = vmatpush1.bf16.msra.mxu0 0
      %1521 = vmatprep.subr.bf16.mxu0 0
      %1522 = vmatpush1.bf16.msra.mxu0 0
      %1523 = vmatprep.subr.bf16.mxu0 0
      %1524 = vmatpush1.bf16.msra.mxu0 0
      %1525 = vmatprep.subr.bf16.mxu0 0
      %1526 = vmatpush1.bf16.msra.mxu0 0
      %1527 = vmatprep.subr.bf16.mxu0 0
      %1528 = vmatpush1.bf16.msra.mxu0 0
      %1529 = vmatprep.subr.bf16.mxu0 0
      %1530 = vmatpush1.bf16.msra.mxu0 0
      %1531 = vmatprep.subr.bf16.mxu0 0
      %1532 = vmatpush1.bf16.msra.mxu0 0
      %1533 = vmatprep.subr.bf16.mxu0 0
      %1534 = vmatpush1.bf16.msra.mxu0 0
      %1535 = vmatprep.subr.bf16.mxu0 0
      %1536 = vmatpush1.bf16.msra.mxu0 0
      %1537 = vmatprep.mubr.bf16.mxu0 0
      %1538 = vmatmul.mubr.bf16.gmra.mrb[0].mxu0 %v1503
      %v1539 = vpop.f32.mrb[0].mxu0
      %v1540 = vadd.f32 %v1486, %v1539
      %v1541 = vpop.f32.mrb[0].mxu0
      %v1542 = vpop.f32.mrb[0].mxu0
      %v1543 = vpop.f32.mrb[0].mxu0
      %1544 = vdwg.mxu0
      %s1545 = scalar_lea.vmem %s6, 32
      %v1546 = vld [vmem:[%s1545] sm:$0xf]
      %v1547 = vld [vmem:[%s1545 + $0x4] sm:$0xf]
      %v1548 = vld [vmem:[%s1545 + $0x8] sm:$0xf]
      %v1549 = vld [vmem:[%s1545 + $0xc] sm:$0xf]
      %v1551 = vrot.slane %v1423, 1
      %v1556 = vunpack.c.l.b16 %v1546
      %v1557 = vunpack.c.l.b16 %v1547
      %v1558 = vunpack.c.l.b16 %v1548
      %v1559 = vunpack.c.l.b16 %v1549
      %v1560 = vpack.c.b16 %v1557, %v1556
      %v1561 = vpack.c.b16 %v1559, %v1558
      %v1565 = vsel %vm354, %v1551, 0
      %1567 = vmatprep.subr.bf16.mxu0 0
      %1568 = vmatpush1.bf16.msra.mxu0 %v1560
      %1569 = vmatprep.subr.bf16.mxu0 0
      %1570 = vmatpush1.bf16.msra.mxu0 %v1561
      %1571 = vmatprep.subr.bf16.mxu0 0
      %1572 = vmatpush1.bf16.msra.mxu0 0
      %1573 = vmatprep.subr.bf16.mxu0 0
      %1574 = vmatpush1.bf16.msra.mxu0 0
      %1575 = vmatprep.subr.bf16.mxu0 0
      %1576 = vmatpush1.bf16.msra.mxu0 0
      %1577 = vmatprep.subr.bf16.mxu0 0
      %1578 = vmatpush1.bf16.msra.mxu0 0
      %1579 = vmatprep.subr.bf16.mxu0 0
      %1580 = vmatpush1.bf16.msra.mxu0 0
      %1581 = vmatprep.subr.bf16.mxu0 0
      %1582 = vmatpush1.bf16.msra.mxu0 0
      %1583 = vmatprep.subr.bf16.mxu0 0
      %1584 = vmatpush1.bf16.msra.mxu0 0
      %1585 = vmatprep.subr.bf16.mxu0 0
      %1586 = vmatpush1.bf16.msra.mxu0 0
      %1587 = vmatprep.subr.bf16.mxu0 0
      %1588 = vmatpush1.bf16.msra.mxu0 0
      %1589 = vmatprep.subr.bf16.mxu0 0
      %1590 = vmatpush1.bf16.msra.mxu0 0
      %1591 = vmatprep.subr.bf16.mxu0 0
      %1592 = vmatpush1.bf16.msra.mxu0 0
      %1593 = vmatprep.subr.bf16.mxu0 0
      %1594 = vmatpush1.bf16.msra.mxu0 0
      %1595 = vmatprep.subr.bf16.mxu0 0
      %1596 = vmatpush1.bf16.msra.mxu0 0
      %1597 = vmatprep.subr.bf16.mxu0 0
      %1598 = vmatpush1.bf16.msra.mxu0 0
      %1599 = vmatprep.mubr.bf16.mxu0 0
      %1600 = vmatmul.mubr.bf16.gmra.mrb[0].mxu0 %v1565
      %v1601 = vpop.f32.mrb[0].mxu0
      %v1602 = vadd.f32 0.0, %v1601
      %v1603 = vpop.f32.mrb[0].mxu0
      %v1604 = vpop.f32.mrb[0].mxu0
      %v1605 = vpop.f32.mrb[0].mxu0
      %1606 = vdwg.mxu0
      %v1607 = vadd.f32 %v1540, %v1602
      %s1608 = scalar_lea.vmem %s6, 48
      %v1609 = vld [vmem:[%s1608] sm:$0xf]
      %v1610 = vld [vmem:[%s1608 + $0x4] sm:$0xf]
      %v1611 = vld [vmem:[%s1608 + $0x8] sm:$0xf]
      %v1612 = vld [vmem:[%s1608 + $0xc] sm:$0xf]
      %v1613 = vrot.slane %v1434, 1
      %v1618 = vunpack.c.l.b16 %v1609
      %v1619 = vunpack.c.l.b16 %v1610
      %v1620 = vunpack.c.l.b16 %v1611
      %v1621 = vunpack.c.l.b16 %v1612
      %v1622 = vpack.c.b16 %v1619, %v1618
      %v1623 = vpack.c.b16 %v1621, %v1620
      %v1627 = vsel %vm354, %v1613, 0
      %1629 = vmatprep.subr.bf16.mxu0 0
      %1630 = vmatpush1.bf16.msra.mxu0 %v1622
      %1631 = vmatprep.subr.bf16.mxu0 0
      %1632 = vmatpush1.bf16.msra.mxu0 %v1623
      %1633 = vmatprep.subr.bf16.mxu0 0
      %1634 = vmatpush1.bf16.msra.mxu0 0
      %1635 = vmatprep.subr.bf16.mxu0 0
      %1636 = vmatpush1.bf16.msra.mxu0 0
      %1637 = vmatprep.subr.bf16.mxu0 0
      %1638 = vmatpush1.bf16.msra.mxu0 0
      %1639 = vmatprep.subr.bf16.mxu0 0
      %1640 = vmatpush1.bf16.msra.mxu0 0
      %1641 = vmatprep.subr.bf16.mxu0 0
      %1642 = vmatpush1.bf16.msra.mxu0 0
      %1643 = vmatprep.subr.bf16.mxu0 0
      %1644 = vmatpush1.bf16.msra.mxu0 0
      %1645 = vmatprep.subr.bf16.mxu0 0
      %1646 = vmatpush1.bf16.msra.mxu0 0
      %1647 = vmatprep.subr.bf16.mxu0 0
      %1648 = vmatpush1.bf16.msra.mxu0 0
      %1649 = vmatprep.subr.bf16.mxu0 0
      %1650 = vmatpush1.bf16.msra.mxu0 0
      %1651 = vmatprep.subr.bf16.mxu0 0
      %1652 = vmatpush1.bf16.msra.mxu0 0
      %1653 = vmatprep.subr.bf16.mxu0 0
      %1654 = vmatpush1.bf16.msra.mxu0 0
      %1655 = vmatprep.subr.bf16.mxu0 0
      %1656 = vmatpush1.bf16.msra.mxu0 0
      %1657 = vmatprep.subr.bf16.mxu0 0
      %1658 = vmatpush1.bf16.msra.mxu0 0
      %1659 = vmatprep.subr.bf16.mxu0 0
      %1660 = vmatpush1.bf16.msra.mxu0 0
      %1661 = vmatprep.mubr.bf16.mxu0 0
      %1662 = vmatmul.mubr.bf16.gmra.mrb[0].mxu0 %v1627
      %v1663 = vpop.f32.mrb[0].mxu0
      %v1664 = vadd.f32 0.0, %v1663
      %v1665 = vpop.f32.mrb[0].mxu0
      %v1666 = vpop.f32.mrb[0].mxu0
      %v1667 = vpop.f32.mrb[0].mxu0
      %1668 = vdwg.mxu0
      %v1669 = vadd.f32 %v1607, %v1664
      %s1670 = scalar_lea.vmem %s6, 64
      %v1671 = vld [vmem:[%s1670] sm:$0xf]
      %v1672 = vld [vmem:[%s1670 + $0x4] sm:$0xf]
      %v1673 = vld [vmem:[%s1670 + $0x8] sm:$0xf]
      %v1674 = vld [vmem:[%s1670 + $0xc] sm:$0xf]
      %v1675 = vrot.slane %v1423, 2
      %v1680 = vunpack.c.l.b16 %v1671
      %v1681 = vunpack.c.l.b16 %v1672
      %v1682 = vunpack.c.l.b16 %v1673
      %v1683 = vunpack.c.l.b16 %v1674
      %v1684 = vpack.c.b16 %v1681, %v1680
      %v1685 = vpack.c.b16 %v1683, %v1682
      %v1689 = vsel %vm354, %v1675, 0
      %1691 = vmatprep.subr.bf16.mxu0 0
      %1692 = vmatpush1.bf16.msra.mxu0 %v1684
      %1693 = vmatprep.subr.bf16.mxu0 0
      %1694 = vmatpush1.bf16.msra.mxu0 %v1685
      %1695 = vmatprep.subr.bf16.mxu0 0
      %1696 = vmatpush1.bf16.msra.mxu0 0
      %1697 = vmatprep.subr.bf16.mxu0 0
      %1698 = vmatpush1.bf16.msra.mxu0 0
      %1699 = vmatprep.subr.bf16.mxu0 0
      %1700 = vmatpush1.bf16.msra.mxu0 0
      %1701 = vmatprep.subr.bf16.mxu0 0
      %1702 = vmatpush1.bf16.msra.mxu0 0
      %1703 = vmatprep.subr.bf16.mxu0 0
      %1704 = vmatpush1.bf16.msra.mxu0 0
      %1705 = vmatprep.subr.bf16.mxu0 0
      %1706 = vmatpush1.bf16.msra.mxu0 0
      %1707 = vmatprep.subr.bf16.mxu0 0
      %1708 = vmatpush1.bf16.msra.mxu0 0
      %1709 = vmatprep.subr.bf16.mxu0 0
      %1710 = vmatpush1.bf16.msra.mxu0 0
      %1711 = vmatprep.subr.bf16.mxu0 0
      %1712 = vmatpush1.bf16.msra.mxu0 0
      %1713 = vmatprep.subr.bf16.mxu0 0
      %1714 = vmatpush1.bf16.msra.mxu0 0
      %1715 = vmatprep.subr.bf16.mxu0 0
      %1716 = vmatpush1.bf16.msra.mxu0 0
      %1717 = vmatprep.subr.bf16.mxu0 0
      %1718 = vmatpush1.bf16.msra.mxu0 0
      %1719 = vmatprep.subr.bf16.mxu0 0
      %1720 = vmatpush1.bf16.msra.mxu0 0
      %1721 = vmatprep.subr.bf16.mxu0 0
      %1722 = vmatpush1.bf16.msra.mxu0 0
      %1723 = vmatprep.mubr.bf16.mxu0 0
      %1724 = vmatmul.mubr.bf16.gmra.mrb[0].mxu0 %v1689
      %v1725 = vpop.f32.mrb[0].mxu0
      %v1726 = vadd.f32 0.0, %v1725
      %v1727 = vpop.f32.mrb[0].mxu0
      %v1728 = vpop.f32.mrb[0].mxu0
      %v1729 = vpop.f32.mrb[0].mxu0
      %1730 = vdwg.mxu0
      %v1731 = vadd.f32 %v1669, %v1726
      %s1732 = scalar_lea.vmem %s6, 80
      %v1733 = vld [vmem:[%s1732] sm:$0xf]
      %v1734 = vld [vmem:[%s1732 + $0x4] sm:$0xf]
      %v1735 = vld [vmem:[%s1732 + $0x8] sm:$0xf]
      %v1736 = vld [vmem:[%s1732 + $0xc] sm:$0xf]
      %v1737 = vrot.slane %v1434, 2
      %v1742 = vunpack.c.l.b16 %v1733
      %v1743 = vunpack.c.l.b16 %v1734
      %v1744 = vunpack.c.l.b16 %v1735
      %v1745 = vunpack.c.l.b16 %v1736
      %v1746 = vpack.c.b16 %v1743, %v1742
      %v1747 = vpack.c.b16 %v1745, %v1744
      %v1751 = vsel %vm354, %v1737, 0
      %1753 = vmatprep.subr.bf16.mxu0 0
      %1754 = vmatpush1.bf16.msra.mxu0 %v1746
      %1755 = vmatprep.subr.bf16.mxu0 0
      %1756 = vmatpush1.bf16.msra.mxu0 %v1747
      %1757 = vmatprep.subr.bf16.mxu0 0
      %1758 = vmatpush1.bf16.msra.mxu0 0
      %1759 = vmatprep.subr.bf16.mxu0 0
      %1760 = vmatpush1.bf16.msra.mxu0 0
      %1761 = vmatprep.subr.bf16.mxu0 0
      %1762 = vmatpush1.bf16.msra.mxu0 0
      %1763 = vmatprep.subr.bf16.mxu0 0
      %1764 = vmatpush1.bf16.msra.mxu0 0
      %1765 = vmatprep.subr.bf16.mxu0 0
      %1766 = vmatpush1.bf16.msra.mxu0 0
      %1767 = vmatprep.subr.bf16.mxu0 0
      %1768 = vmatpush1.bf16.msra.mxu0 0
      %1769 = vmatprep.subr.bf16.mxu0 0
      %1770 = vmatpush1.bf16.msra.mxu0 0
      %1771 = vmatprep.subr.bf16.mxu0 0
      %1772 = vmatpush1.bf16.msra.mxu0 0
      %1773 = vmatprep.subr.bf16.mxu0 0
      %1774 = vmatpush1.bf16.msra.mxu0 0
      %1775 = vmatprep.subr.bf16.mxu0 0
      %1776 = vmatpush1.bf16.msra.mxu0 0
      %1777 = vmatprep.subr.bf16.mxu0 0
      %1778 = vmatpush1.bf16.msra.mxu0 0
      %1779 = vmatprep.subr.bf16.mxu0 0
      %1780 = vmatpush1.bf16.msra.mxu0 0
      %1781 = vmatprep.subr.bf16.mxu0 0
      %1782 = vmatpush1.bf16.msra.mxu0 0
      %1783 = vmatprep.subr.bf16.mxu0 0
      %1784 = vmatpush1.bf16.msra.mxu0 0
      %1785 = vmatprep.mubr.bf16.mxu0 0
      %1786 = vmatmul.mubr.bf16.gmra.mrb[0].mxu0 %v1751
      %v1787 = vpop.f32.mrb[0].mxu0
      %v1788 = vadd.f32 0.0, %v1787
      %v1789 = vpop.f32.mrb[0].mxu0
      %v1790 = vpop.f32.mrb[0].mxu0
      %v1791 = vpop.f32.mrb[0].mxu0
      %1792 = vdwg.mxu0
      %v1793 = vadd.f32 %v1731, %v1788
      %s1794 = scalar_lea.vmem %s6, 96
      %v1795 = vld [vmem:[%s1794] sm:$0xf]
      %v1796 = vld [vmem:[%s1794 + $0x4] sm:$0xf]
      %v1797 = vld [vmem:[%s1794 + $0x8] sm:$0xf]
      %v1798 = vld [vmem:[%s1794 + $0xc] sm:$0xf]
      %v1799 = vrot.slane %v1423, 3
      %v1804 = vunpack.c.l.b16 %v1795
      %v1805 = vunpack.c.l.b16 %v1796
      %v1806 = vunpack.c.l.b16 %v1797
      %v1807 = vunpack.c.l.b16 %v1798
      %v1808 = vpack.c.b16 %v1805, %v1804
      %v1809 = vpack.c.b16 %v1807, %v1806
      %v1813 = vsel %vm354, %v1799, 0
      %1815 = vmatprep.subr.bf16.mxu0 0
      %1816 = vmatpush1.bf16.msra.mxu0 %v1808
      %1817 = vmatprep.subr.bf16.mxu0 0
      %1818 = vmatpush1.bf16.msra.mxu0 %v1809
      %1819 = vmatprep.subr.bf16.mxu0 0
      %1820 = vmatpush1.bf16.msra.mxu0 0
      %1821 = vmatprep.subr.bf16.mxu0 0
      %1822 = vmatpush1.bf16.msra.mxu0 0
      %1823 = vmatprep.subr.bf16.mxu0 0
      %1824 = vmatpush1.bf16.msra.mxu0 0
      %1825 = vmatprep.subr.bf16.mxu0 0
      %1826 = vmatpush1.bf16.msra.mxu0 0
      %1827 = vmatprep.subr.bf16.mxu0 0
      %1828 = vmatpush1.bf16.msra.mxu0 0
      %1829 = vmatprep.subr.bf16.mxu0 0
      %1830 = vmatpush1.bf16.msra.mxu0 0
      %1831 = vmatprep.subr.bf16.mxu0 0
      %1832 = vmatpush1.bf16.msra.mxu0 0
      %1833 = vmatprep.subr.bf16.mxu0 0
      %1834 = vmatpush1.bf16.msra.mxu0 0
      %1835 = vmatprep.subr.bf16.mxu0 0
      %1836 = vmatpush1.bf16.msra.mxu0 0
      %1837 = vmatprep.subr.bf16.mxu0 0
      %1838 = vmatpush1.bf16.msra.mxu0 0
      %1839 = vmatprep.subr.bf16.mxu0 0
      %1840 = vmatpush1.bf16.msra.mxu0 0
      %1841 = vmatprep.subr.bf16.mxu0 0
      %1842 = vmatpush1.bf16.msra.mxu0 0
      %1843 = vmatprep.subr.bf16.mxu0 0
      %1844 = vmatpush1.bf16.msra.mxu0 0
      %1845 = vmatprep.subr.bf16.mxu0 0
      %1846 = vmatpush1.bf16.msra.mxu0 0
      %1847 = vmatprep.mubr.bf16.mxu0 0
      %1848 = vmatmul.mubr.bf16.gmra.mrb[0].mxu0 %v1813
      %v1849 = vpop.f32.mrb[0].mxu0
      %v1850 = vadd.f32 0.0, %v1849
      %v1851 = vpop.f32.mrb[0].mxu0
      %v1852 = vpop.f32.mrb[0].mxu0
      %v1853 = vpop.f32.mrb[0].mxu0
      %1854 = vdwg.mxu0
      %v1855 = vadd.f32 %v1793, %v1850
      %s1856 = scalar_lea.vmem %s6, 112
      %v1857 = vld [vmem:[%s1856] sm:$0xf]
      %v1858 = vld [vmem:[%s1856 + $0x4] sm:$0xf]
      %v1859 = vld [vmem:[%s1856 + $0x8] sm:$0xf]
      %v1860 = vld [vmem:[%s1856 + $0xc] sm:$0xf]
      %v1861 = vrot.slane %v1434, 3
      %v1866 = vunpack.c.l.b16 %v1857
      %v1867 = vunpack.c.l.b16 %v1858
      %v1868 = vunpack.c.l.b16 %v1859
      %v1869 = vunpack.c.l.b16 %v1860
      %v1870 = vpack.c.b16 %v1867, %v1866
      %v1871 = vpack.c.b16 %v1869, %v1868
      %v1875 = vsel %vm354, %v1861, 0
      %1877 = vmatprep.subr.bf16.mxu0 0
      %1878 = vmatpush1.bf16.msra.mxu0 %v1870
      %1879 = vmatprep.subr.bf16.mxu0 0
      %1880 = vmatpush1.bf16.msra.mxu0 %v1871
      %1881 = vmatprep.subr.bf16.mxu0 0
      %1882 = vmatpush1.bf16.msra.mxu0 0
      %1883 = vmatprep.subr.bf16.mxu0 0
      %1884 = vmatpush1.bf16.msra.mxu0 0
      %1885 = vmatprep.subr.bf16.mxu0 0
      %1886 = vmatpush1.bf16.msra.mxu0 0
      %1887 = vmatprep.subr.bf16.mxu0 0
      %1888 = vmatpush1.bf16.msra.mxu0 0
      %1889 = vmatprep.subr.bf16.mxu0 0
      %1890 = vmatpush1.bf16.msra.mxu0 0
      %1891 = vmatprep.subr.bf16.mxu0 0
      %1892 = vmatpush1.bf16.msra.mxu0 0
      %1893 = vmatprep.subr.bf16.mxu0 0
      %1894 = vmatpush1.bf16.msra.mxu0 0
      %1895 = vmatprep.subr.bf16.mxu0 0
      %1896 = vmatpush1.bf16.msra.mxu0 0
      %1897 = vmatprep.subr.bf16.mxu0 0
      %1898 = vmatpush1.bf16.msra.mxu0 0
      %1899 = vmatprep.subr.bf16.mxu0 0
      %1900 = vmatpush1.bf16.msra.mxu0 0
      %1901 = vmatprep.subr.bf16.mxu0 0
      %1902 = vmatpush1.bf16.msra.mxu0 0
      %1903 = vmatprep.subr.bf16.mxu0 0
      %1904 = vmatpush1.bf16.msra.mxu0 0
      %1905 = vmatprep.subr.bf16.mxu0 0
      %1906 = vmatpush1.bf16.msra.mxu0 0
      %1907 = vmatprep.subr.bf16.mxu0 0
      %1908 = vmatpush1.bf16.msra.mxu0 0
      %1909 = vmatprep.mubr.bf16.mxu0 0
      %1910 = vmatmul.mubr.bf16.gmra.mrb[0].mxu0 %v1875
      %v1911 = vpop.f32.mrb[0].mxu0
      %v1912 = vadd.f32 0.0, %v1911
      %v1913 = vpop.f32.mrb[0].mxu0
      %v1914 = vpop.f32.mrb[0].mxu0
      %v1915 = vpop.f32.mrb[0].mxu0
      %1916 = vdwg.mxu0
      %v1917 = vadd.f32 %v1855, %v1912
      %v1918 = vpack.c.bf16 %v1422, %v1422
      %s1919 = scalar_lea.vmem %s6, 128
      %v1920 = vld [vmem:[%s1919] sm:$0xf]
      %v1921 = vld [vmem:[%s1919 + $0x4] sm:$0xf]
      %v1922 = vld [vmem:[%s1919 + $0x8] sm:$0xf]
      %v1923 = vld [vmem:[%s1919 + $0xc] sm:$0xf]
      %v1928 = vunpack.c.l.b16 %v1920
      %v1929 = vunpack.c.l.b16 %v1921
      %v1930 = vunpack.c.l.b16 %v1922
      %v1931 = vunpack.c.l.b16 %v1923
      %v1932 = vpack.c.b16 %v1929, %v1928
      %v1933 = vpack.c.b16 %v1931, %v1930
      %v1937 = vsel %vm354, %v1918, 0
      %1939 = vmatprep.subr.bf16.mxu0 0
      %1940 = vmatpush1.bf16.msra.mxu0 %v1932
      %1941 = vmatprep.subr.bf16.mxu0 0
      %1942 = vmatpush1.bf16.msra.mxu0 %v1933
      %1943 = vmatprep.subr.bf16.mxu0 0
      %1944 = vmatpush1.bf16.msra.mxu0 0
      %1945 = vmatprep.subr.bf16.mxu0 0
      %1946 = vmatpush1.bf16.msra.mxu0 0
      %1947 = vmatprep.subr.bf16.mxu0 0
      %1948 = vmatpush1.bf16.msra.mxu0 0
      %1949 = vmatprep.subr.bf16.mxu0 0
      %1950 = vmatpush1.bf16.msra.mxu0 0
      %1951 = vmatprep.subr.bf16.mxu0 0
      %1952 = vmatpush1.bf16.msra.mxu0 0
      %1953 = vmatprep.subr.bf16.mxu0 0
      %1954 = vmatpush1.bf16.msra.mxu0 0
      %1955 = vmatprep.subr.bf16.mxu0 0
      %1956 = vmatpush1.bf16.msra.mxu0 0
      %1957 = vmatprep.subr.bf16.mxu0 0
      %1958 = vmatpush1.bf16.msra.mxu0 0
      %1959 = vmatprep.subr.bf16.mxu0 0
      %1960 = vmatpush1.bf16.msra.mxu0 0
      %1961 = vmatprep.subr.bf16.mxu0 0
      %1962 = vmatpush1.bf16.msra.mxu0 0
      %1963 = vmatprep.subr.bf16.mxu0 0
      %1964 = vmatpush1.bf16.msra.mxu0 0
      %1965 = vmatprep.subr.bf16.mxu0 0
      %1966 = vmatpush1.bf16.msra.mxu0 0
      %1967 = vmatprep.subr.bf16.mxu0 0
      %1968 = vmatpush1.bf16.msra.mxu0 0
      %1969 = vmatprep.subr.bf16.mxu0 0
      %1970 = vmatpush1.bf16.msra.mxu0 0
      %1971 = vmatprep.mubr.bf16.mxu0 0
      %1972 = vmatmul.mubr.bf16.gmra.mrb[0].mxu0 %v1937
      %v1973 = vpop.f32.mrb[0].mxu0
      %v1974 = vadd.f32 0.0, %v1973
      %v1975 = vpop.f32.mrb[0].mxu0
      %v1976 = vpop.f32.mrb[0].mxu0
      %v1977 = vpop.f32.mrb[0].mxu0
      %1978 = vdwg.mxu0
      %v1979 = vadd.f32 %v1917, %v1974
      %s1980 = scalar_lea.vmem %s6, 144
      %v1981 = vld [vmem:[%s1980] sm:$0xf]
      %v1982 = vld [vmem:[%s1980 + $0x4] sm:$0xf]
      %v1983 = vld [vmem:[%s1980 + $0x8] sm:$0xf]
      %v1984 = vld [vmem:[%s1980 + $0xc] sm:$0xf]
      %v1985 = vshrl.u32 %v1918, 16
      %v1991 = vunpack.c.l.b16 %v1981
      %v1992 = vunpack.c.l.b16 %v1982
      %v1993 = vunpack.c.l.b16 %v1983
      %v1994 = vunpack.c.l.b16 %v1984
      %v1995 = vpack.c.b16 %v1992, %v1991
      %v1996 = vpack.c.b16 %v1994, %v1993
      %v2000 = vsel %vm354, %v1985, 0
      %2002 = vmatprep.subr.bf16.mxu0 0
      %2003 = vmatpush1.bf16.msra.mxu0 %v1995
      %2004 = vmatprep.subr.bf16.mxu0 0
      %2005 = vmatpush1.bf16.msra.mxu0 %v1996
      %2006 = vmatprep.subr.bf16.mxu0 0
      %2007 = vmatpush1.bf16.msra.mxu0 0
      %2008 = vmatprep.subr.bf16.mxu0 0
      %2009 = vmatpush1.bf16.msra.mxu0 0
      %2010 = vmatprep.subr.bf16.mxu0 0
      %2011 = vmatpush1.bf16.msra.mxu0 0
      %2012 = vmatprep.subr.bf16.mxu0 0
      %2013 = vmatpush1.bf16.msra.mxu0 0
      %2014 = vmatprep.subr.bf16.mxu0 0
      %2015 = vmatpush1.bf16.msra.mxu0 0
      %2016 = vmatprep.subr.bf16.mxu0 0
      %2017 = vmatpush1.bf16.msra.mxu0 0
      %2018 = vmatprep.subr.bf16.mxu0 0
      %2019 = vmatpush1.bf16.msra.mxu0 0
      %2020 = vmatprep.subr.bf16.mxu0 0
      %2021 = vmatpush1.bf16.msra.mxu0 0
      %2022 = vmatprep.subr.bf16.mxu0 0
      %2023 = vmatpush1.bf16.msra.mxu0 0
      %2024 = vmatprep.subr.bf16.mxu0 0
      %2025 = vmatpush1.bf16.msra.mxu0 0
      %2026 = vmatprep.subr.bf16.mxu0 0
      %2027 = vmatpush1.bf16.msra.mxu0 0
      %2028 = vmatprep.subr.bf16.mxu0 0
      %2029 = vmatpush1.bf16.msra.mxu0 0
      %2030 = vmatprep.subr.bf16.mxu0 0
      %2031 = vmatpush1.bf16.msra.mxu0 0
      %2032 = vmatprep.subr.bf16.mxu0 0
      %2033 = vmatpush1.bf16.msra.mxu0 0
      %2034 = vmatprep.mubr.bf16.mxu0 0
      %2035 = vmatmul.mubr.bf16.gmra.mrb[0].mxu0 %v2000
      %v2036 = vpop.f32.mrb[0].mxu0
      %v2037 = vadd.f32 0.0, %v2036
      %v2038 = vpop.f32.mrb[0].mxu0
      %v2039 = vpop.f32.mrb[0].mxu0
      %v2040 = vpop.f32.mrb[0].mxu0
      %2041 = vdwg.mxu0
      %v2042 = vadd.f32 %v1979, %v2037
      %s2043 = scalar_lea.vmem %s6, 160
      %v2044 = vld [vmem:[%s2043] sm:$0xf]
      %v2045 = vld [vmem:[%s2043 + $0x4] sm:$0xf]
      %v2046 = vld [vmem:[%s2043 + $0x8] sm:$0xf]
      %v2047 = vld [vmem:[%s2043 + $0xc] sm:$0xf]
      %v2049 = vrot.slane %v1918, 1
      %v2054 = vunpack.c.l.b16 %v2044
      %v2055 = vunpack.c.l.b16 %v2045
      %v2056 = vunpack.c.l.b16 %v2046
      %v2057 = vunpack.c.l.b16 %v2047
      %v2058 = vpack.c.b16 %v2055, %v2054
      %v2059 = vpack.c.b16 %v2057, %v2056
      %v2063 = vsel %vm354, %v2049, 0
      %2065 = vmatprep.subr.bf16.mxu0 0
      %2066 = vmatpush1.bf16.msra.mxu0 %v2058
      %2067 = vmatprep.subr.bf16.mxu0 0
      %2068 = vmatpush1.bf16.msra.mxu0 %v2059
      %2069 = vmatprep.subr.bf16.mxu0 0
      %2070 = vmatpush1.bf16.msra.mxu0 0
      %2071 = vmatprep.subr.bf16.mxu0 0
      %2072 = vmatpush1.bf16.msra.mxu0 0
      %2073 = vmatprep.subr.bf16.mxu0 0
      %2074 = vmatpush1.bf16.msra.mxu0 0
      %2075 = vmatprep.subr.bf16.mxu0 0
      %2076 = vmatpush1.bf16.msra.mxu0 0
      %2077 = vmatprep.subr.bf16.mxu0 0
      %2078 = vmatpush1.bf16.msra.mxu0 0
      %2079 = vmatprep.subr.bf16.mxu0 0
      %2080 = vmatpush1.bf16.msra.mxu0 0
      %2081 = vmatprep.subr.bf16.mxu0 0
      %2082 = vmatpush1.bf16.msra.mxu0 0
      %2083 = vmatprep.subr.bf16.mxu0 0
      %2084 = vmatpush1.bf16.msra.mxu0 0
      %2085 = vmatprep.subr.bf16.mxu0 0
      %2086 = vmatpush1.bf16.msra.mxu0 0
      %2087 = vmatprep.subr.bf16.mxu0 0
      %2088 = vmatpush1.bf16.msra.mxu0 0
      %2089 = vmatprep.subr.bf16.mxu0 0
      %2090 = vmatpush1.bf16.msra.mxu0 0
      %2091 = vmatprep.subr.bf16.mxu0 0
      %2092 = vmatpush1.bf16.msra.mxu0 0
      %2093 = vmatprep.subr.bf16.mxu0 0
      %2094 = vmatpush1.bf16.msra.mxu0 0
      %2095 = vmatprep.subr.bf16.mxu0 0
      %2096 = vmatpush1.bf16.msra.mxu0 0
      %2097 = vmatprep.mubr.bf16.mxu0 0
      %2098 = vmatmul.mubr.bf16.gmra.mrb[0].mxu0 %v2063
      %v2099 = vpop.f32.mrb[0].mxu0
      %v2100 = vadd.f32 0.0, %v2099
      %v2101 = vpop.f32.mrb[0].mxu0
      %v2102 = vpop.f32.mrb[0].mxu0
      %v2103 = vpop.f32.mrb[0].mxu0
      %2104 = vdwg.mxu0
      %v2105 = vadd.f32 %v2042, %v2100
      %s2106 = scalar_lea.vmem %s6, 176
      %v2107 = vld [vmem:[%s2106] sm:$0xf]
      %v2108 = vld [vmem:[%s2106 + $0x4] sm:$0xf]
      %v2109 = vld [vmem:[%s2106 + $0x8] sm:$0xf]
      %v2110 = vld [vmem:[%s2106 + $0xc] sm:$0xf]
      %v2111 = vrot.slane %v1985, 1
      %v2116 = vunpack.c.l.b16 %v2107
      %v2117 = vunpack.c.l.b16 %v2108
      %v2118 = vunpack.c.l.b16 %v2109
      %v2119 = vunpack.c.l.b16 %v2110
      %v2120 = vpack.c.b16 %v2117, %v2116
      %v2121 = vpack.c.b16 %v2119, %v2118
      %v2125 = vsel %vm354, %v2111, 0
      %2127 = vmatprep.subr.bf16.mxu0 0
      %2128 = vmatpush1.bf16.msra.mxu0 %v2120
      %2129 = vmatprep.subr.bf16.mxu0 0
      %2130 = vmatpush1.bf16.msra.mxu0 %v2121
      %2131 = vmatprep.subr.bf16.mxu0 0
      %2132 = vmatpush1.bf16.msra.mxu0 0
      %2133 = vmatprep.subr.bf16.mxu0 0
      %2134 = vmatpush1.bf16.msra.mxu0 0
      %2135 = vmatprep.subr.bf16.mxu0 0
      %2136 = vmatpush1.bf16.msra.mxu0 0
      %2137 = vmatprep.subr.bf16.mxu0 0
      %2138 = vmatpush1.bf16.msra.mxu0 0
      %2139 = vmatprep.subr.bf16.mxu0 0
      %2140 = vmatpush1.bf16.msra.mxu0 0
      %2141 = vmatprep.subr.bf16.mxu0 0
      %2142 = vmatpush1.bf16.msra.mxu0 0
      %2143 = vmatprep.subr.bf16.mxu0 0
      %2144 = vmatpush1.bf16.msra.mxu0 0
      %2145 = vmatprep.subr.bf16.mxu0 0
      %2146 = vmatpush1.bf16.msra.mxu0 0
      %2147 = vmatprep.subr.bf16.mxu0 0
      %2148 = vmatpush1.bf16.msra.mxu0 0
      %2149 = vmatprep.subr.bf16.mxu0 0
      %2150 = vmatpush1.bf16.msra.mxu0 0
      %2151 = vmatprep.subr.bf16.mxu0 0
      %2152 = vmatpush1.bf16.msra.mxu0 0
      %2153 = vmatprep.subr.bf16.mxu0 0
      %2154 = vmatpush1.bf16.msra.mxu0 0
      %2155 = vmatprep.subr.bf16.mxu0 0
      %2156 = vmatpush1.bf16.msra.mxu0 0
      %2157 = vmatprep.subr.bf16.mxu0 0
      %2158 = vmatpush1.bf16.msra.mxu0 0
      %2159 = vmatprep.mubr.bf16.mxu0 0
      %2160 = vmatmul.mubr.bf16.gmra.mrb[0].mxu0 %v2125
      %v2161 = vpop.f32.mrb[0].mxu0
      %v2162 = vadd.f32 0.0, %v2161
      %v2163 = vpop.f32.mrb[0].mxu0
      %v2164 = vpop.f32.mrb[0].mxu0
      %v2165 = vpop.f32.mrb[0].mxu0
      %2166 = vdwg.mxu0
      %v2167 = vadd.f32 %v2105, %v2162
      %s2168 = scalar_lea.vmem %s6, 192
      %v2169 = vld [vmem:[%s2168] sm:$0xf]
      %v2170 = vld [vmem:[%s2168 + $0x4] sm:$0xf]
      %v2171 = vld [vmem:[%s2168 + $0x8] sm:$0xf]
      %v2172 = vld [vmem:[%s2168 + $0xc] sm:$0xf]
      %v2173 = vrot.slane %v1918, 2
      %v2178 = vunpack.c.l.b16 %v2169
      %v2179 = vunpack.c.l.b16 %v2170
      %v2180 = vunpack.c.l.b16 %v2171
      %v2181 = vunpack.c.l.b16 %v2172
      %v2182 = vpack.c.b16 %v2179, %v2178
      %v2183 = vpack.c.b16 %v2181, %v2180
      %v2187 = vsel %vm354, %v2173, 0
      %2189 = vmatprep.subr.bf16.mxu0 0
      %2190 = vmatpush1.bf16.msra.mxu0 %v2182
      %2191 = vmatprep.subr.bf16.mxu0 0
      %2192 = vmatpush1.bf16.msra.mxu0 %v2183
      %2193 = vmatprep.subr.bf16.mxu0 0
      %2194 = vmatpush1.bf16.msra.mxu0 0
      %2195 = vmatprep.subr.bf16.mxu0 0
      %2196 = vmatpush1.bf16.msra.mxu0 0
      %2197 = vmatprep.subr.bf16.mxu0 0
      %2198 = vmatpush1.bf16.msra.mxu0 0
      %2199 = vmatprep.subr.bf16.mxu0 0
      %2200 = vmatpush1.bf16.msra.mxu0 0
      %2201 = vmatprep.subr.bf16.mxu0 0
      %2202 = vmatpush1.bf16.msra.mxu0 0
      %2203 = vmatprep.subr.bf16.mxu0 0
      %2204 = vmatpush1.bf16.msra.mxu0 0
      %2205 = vmatprep.subr.bf16.mxu0 0
      %2206 = vmatpush1.bf16.msra.mxu0 0
      %2207 = vmatprep.subr.bf16.mxu0 0
      %2208 = vmatpush1.bf16.msra.mxu0 0
      %2209 = vmatprep.subr.bf16.mxu0 0
      %2210 = vmatpush1.bf16.msra.mxu0 0
      %2211 = vmatprep.subr.bf16.mxu0 0
      %2212 = vmatpush1.bf16.msra.mxu0 0
      %2213 = vmatprep.subr.bf16.mxu0 0
      %2214 = vmatpush1.bf16.msra.mxu0 0
      %2215 = vmatprep.subr.bf16.mxu0 0
      %2216 = vmatpush1.bf16.msra.mxu0 0
      %2217 = vmatprep.subr.bf16.mxu0 0
      %2218 = vmatpush1.bf16.msra.mxu0 0
      %2219 = vmatprep.subr.bf16.mxu0 0
      %2220 = vmatpush1.bf16.msra.mxu0 0
      %2221 = vmatprep.mubr.bf16.mxu0 0
      %2222 = vmatmul.mubr.bf16.gmra.mrb[0].mxu0 %v2187
      %v2223 = vpop.f32.mrb[0].mxu0
      %v2224 = vadd.f32 0.0, %v2223
      %v2225 = vpop.f32.mrb[0].mxu0
      %v2226 = vpop.f32.mrb[0].mxu0
      %v2227 = vpop.f32.mrb[0].mxu0
      %2228 = vdwg.mxu0
      %v2229 = vadd.f32 %v2167, %v2224
      %s2230 = scalar_lea.vmem %s6, 208
      %v2231 = vld [vmem:[%s2230] sm:$0xf]
      %v2232 = vld [vmem:[%s2230 + $0x4] sm:$0xf]
      %v2233 = vld [vmem:[%s2230 + $0x8] sm:$0xf]
      %v2234 = vld [vmem:[%s2230 + $0xc] sm:$0xf]
      %v2235 = vrot.slane %v1985, 2
      %v2240 = vunpack.c.l.b16 %v2231
      %v2241 = vunpack.c.l.b16 %v2232
      %v2242 = vunpack.c.l.b16 %v2233
      %v2243 = vunpack.c.l.b16 %v2234
      %v2244 = vpack.c.b16 %v2241, %v2240
      %v2245 = vpack.c.b16 %v2243, %v2242
      %v2249 = vsel %vm354, %v2235, 0
      %2251 = vmatprep.subr.bf16.mxu0 0
      %2252 = vmatpush1.bf16.msra.mxu0 %v2244
      %2253 = vmatprep.subr.bf16.mxu0 0
      %2254 = vmatpush1.bf16.msra.mxu0 %v2245
      %2255 = vmatprep.subr.bf16.mxu0 0
      %2256 = vmatpush1.bf16.msra.mxu0 0
      %2257 = vmatprep.subr.bf16.mxu0 0
      %2258 = vmatpush1.bf16.msra.mxu0 0
      %2259 = vmatprep.subr.bf16.mxu0 0
      %2260 = vmatpush1.bf16.msra.mxu0 0
      %2261 = vmatprep.subr.bf16.mxu0 0
      %2262 = vmatpush1.bf16.msra.mxu0 0
      %2263 = vmatprep.subr.bf16.mxu0 0
      %2264 = vmatpush1.bf16.msra.mxu0 0
      %2265 = vmatprep.subr.bf16.mxu0 0
      %2266 = vmatpush1.bf16.msra.mxu0 0
      %2267 = vmatprep.subr.bf16.mxu0 0
      %2268 = vmatpush1.bf16.msra.mxu0 0
      %2269 = vmatprep.subr.bf16.mxu0 0
      %2270 = vmatpush1.bf16.msra.mxu0 0
      %2271 = vmatprep.subr.bf16.mxu0 0
      %2272 = vmatpush1.bf16.msra.mxu0 0
      %2273 = vmatprep.subr.bf16.mxu0 0
      %2274 = vmatpush1.bf16.msra.mxu0 0
      %2275 = vmatprep.subr.bf16.mxu0 0
      %2276 = vmatpush1.bf16.msra.mxu0 0
      %2277 = vmatprep.subr.bf16.mxu0 0
      %2278 = vmatpush1.bf16.msra.mxu0 0
      %2279 = vmatprep.subr.bf16.mxu0 0
      %2280 = vmatpush1.bf16.msra.mxu0 0
      %2281 = vmatprep.subr.bf16.mxu0 0
      %2282 = vmatpush1.bf16.msra.mxu0 0
      %2283 = vmatprep.mubr.bf16.mxu0 0
      %2284 = vmatmul.mubr.bf16.gmra.mrb[0].mxu0 %v2249
      %v2285 = vpop.f32.mrb[0].mxu0
      %v2286 = vadd.f32 0.0, %v2285
      %v2287 = vpop.f32.mrb[0].mxu0
      %v2288 = vpop.f32.mrb[0].mxu0
      %v2289 = vpop.f32.mrb[0].mxu0
      %2290 = vdwg.mxu0
      %v2291 = vadd.f32 %v2229, %v2286
      %s2292 = scalar_lea.vmem %s6, 224
      %v2293 = vld [vmem:[%s2292] sm:$0xf]
      %v2294 = vld [vmem:[%s2292 + $0x4] sm:$0xf]
      %v2295 = vld [vmem:[%s2292 + $0x8] sm:$0xf]
      %v2296 = vld [vmem:[%s2292 + $0xc] sm:$0xf]
      %v2297 = vrot.slane %v1918, 3
      %v2302 = vunpack.c.l.b16 %v2293
      %v2303 = vunpack.c.l.b16 %v2294
      %v2304 = vunpack.c.l.b16 %v2295
      %v2305 = vunpack.c.l.b16 %v2296
      %v2306 = vpack.c.b16 %v2303, %v2302
      %v2307 = vpack.c.b16 %v2305, %v2304
      %v2311 = vsel %vm354, %v2297, 0
      %2313 = vmatprep.subr.bf16.mxu0 0
      %2314 = vmatpush1.bf16.msra.mxu0 %v2306
      %2315 = vmatprep.subr.bf16.mxu0 0
      %2316 = vmatpush1.bf16.msra.mxu0 %v2307
      %2317 = vmatprep.subr.bf16.mxu0 0
      %2318 = vmatpush1.bf16.msra.mxu0 0
      %2319 = vmatprep.subr.bf16.mxu0 0
      %2320 = vmatpush1.bf16.msra.mxu0 0
      %2321 = vmatprep.subr.bf16.mxu0 0
      %2322 = vmatpush1.bf16.msra.mxu0 0
      %2323 = vmatprep.subr.bf16.mxu0 0
      %2324 = vmatpush1.bf16.msra.mxu0 0
      %2325 = vmatprep.subr.bf16.mxu0 0
      %2326 = vmatpush1.bf16.msra.mxu0 0
      %2327 = vmatprep.subr.bf16.mxu0 0
      %2328 = vmatpush1.bf16.msra.mxu0 0
      %2329 = vmatprep.subr.bf16.mxu0 0
      %2330 = vmatpush1.bf16.msra.mxu0 0
      %2331 = vmatprep.subr.bf16.mxu0 0
      %2332 = vmatpush1.bf16.msra.mxu0 0
      %2333 = vmatprep.subr.bf16.mxu0 0
      %2334 = vmatpush1.bf16.msra.mxu0 0
      %2335 = vmatprep.subr.bf16.mxu0 0
      %2336 = vmatpush1.bf16.msra.mxu0 0
      %2337 = vmatprep.subr.bf16.mxu0 0
      %2338 = vmatpush1.bf16.msra.mxu0 0
      %2339 = vmatprep.subr.bf16.mxu0 0
      %2340 = vmatpush1.bf16.msra.mxu0 0
      %2341 = vmatprep.subr.bf16.mxu0 0
      %2342 = vmatpush1.bf16.msra.mxu0 0
      %2343 = vmatprep.subr.bf16.mxu0 0
      %2344 = vmatpush1.bf16.msra.mxu0 0
      %2345 = vmatprep.mubr.bf16.mxu0 0
      %2346 = vmatmul.mubr.bf16.gmra.mrb[0].mxu0 %v2311
      %v2347 = vpop.f32.mrb[0].mxu0
      %v2348 = vadd.f32 0.0, %v2347
      %v2349 = vpop.f32.mrb[0].mxu0
      %v2350 = vpop.f32.mrb[0].mxu0
      %v2351 = vpop.f32.mrb[0].mxu0
      %2352 = vdwg.mxu0
      %v2353 = vadd.f32 %v2291, %v2348
      %s2354 = scalar_lea.vmem %s6, 240
      %v2355 = vld [vmem:[%s2354] sm:$0xf]
      %v2356 = vld [vmem:[%s2354 + $0x4] sm:$0xf]
      %v2357 = vld [vmem:[%s2354 + $0x8] sm:$0xf]
      %v2358 = vld [vmem:[%s2354 + $0xc] sm:$0xf]
      %v2359 = vrot.slane %v1985, 3
      %v2364 = vunpack.c.l.b16 %v2355
      %v2365 = vunpack.c.l.b16 %v2356
      %v2366 = vunpack.c.l.b16 %v2357
      %v2367 = vunpack.c.l.b16 %v2358
      %v2368 = vpack.c.b16 %v2365, %v2364
      %v2369 = vpack.c.b16 %v2367, %v2366
      %v2373 = vsel %vm354, %v2359, 0
      %2375 = vmatprep.subr.bf16.mxu0 0
      %2376 = vmatpush1.bf16.msra.mxu0 %v2368
      %2377 = vmatprep.subr.bf16.mxu0 0
      %2378 = vmatpush1.bf16.msra.mxu0 %v2369
      %2379 = vmatprep.subr.bf16.mxu0 0
      %2380 = vmatpush1.bf16.msra.mxu0 0
      %2381 = vmatprep.subr.bf16.mxu0 0
      %2382 = vmatpush1.bf16.msra.mxu0 0
      %2383 = vmatprep.subr.bf16.mxu0 0
      %2384 = vmatpush1.bf16.msra.mxu0 0
      %2385 = vmatprep.subr.bf16.mxu0 0
      %2386 = vmatpush1.bf16.msra.mxu0 0
      %2387 = vmatprep.subr.bf16.mxu0 0
      %2388 = vmatpush1.bf16.msra.mxu0 0
      %2389 = vmatprep.subr.bf16.mxu0 0
      %2390 = vmatpush1.bf16.msra.mxu0 0
      %2391 = vmatprep.subr.bf16.mxu0 0
      %2392 = vmatpush1.bf16.msra.mxu0 0
      %2393 = vmatprep.subr.bf16.mxu0 0
      %2394 = vmatpush1.bf16.msra.mxu0 0
      %2395 = vmatprep.subr.bf16.mxu0 0
      %2396 = vmatpush1.bf16.msra.mxu0 0
      %2397 = vmatprep.subr.bf16.mxu0 0
      %2398 = vmatpush1.bf16.msra.mxu0 0
      %2399 = vmatprep.subr.bf16.mxu0 0
      %2400 = vmatpush1.bf16.msra.mxu0 0
      %2401 = vmatprep.subr.bf16.mxu0 0
      %2402 = vmatpush1.bf16.msra.mxu0 0
      %2403 = vmatprep.subr.bf16.mxu0 0
      %2404 = vmatpush1.bf16.msra.mxu0 0
      %2405 = vmatprep.subr.bf16.mxu0 0
      %2406 = vmatpush1.bf16.msra.mxu0 0
      %2407 = vmatprep.mubr.bf16.mxu0 0
      %2408 = vmatmul.mubr.bf16.gmra.mrb[0].mxu0 %v2373
      %v2409 = vpop.f32.mrb[0].mxu0
      %v2410 = vadd.f32 0.0, %v2409
      %v2411 = vpop.f32.mrb[0].mxu0
      %v2412 = vpop.f32.mrb[0].mxu0
      %v2413 = vpop.f32.mrb[0].mxu0
      %2414 = vdwg.mxu0
      %v2415 = vadd.f32 %v2353, %v2410
      %v2416 = vld [vmem:[%s7] sm:$0x1]
      %v2417 = vadd.f32 %v2415, %v2416
      %v2418 = vmax.f32 %v2417, 0.0
      %2419 = vst [vmem:[%s301] sm:$0x1] %v2418
      %p2420 = scmp.lt.s32.totalorder %s19, 1
      %s2421 = scalar_select %p2420, %s19, 1
      %s2422 = scalar_lea.vmem %s8, %s2421
      // Predicated region
      $region53: #{pretrained_frozen_forward.1} parent=51 // pred_check
        %p2423 = pneg %p210
      $region54: #{pretrained_frozen_forward.1} parent=51 // pred_check_branch
        %2425 = sbr.rel (%p2423) target = $region56
      $region55: #{pretrained_frozen_forward.1} parent=51 // pred_region
        _
      $region56: #{pretrained_frozen_forward.1} parent=51 // pred_fallthru
        _
    $region52: #{pretrained_frozen_forward.1} parent=5 // pred_fallthru
      _
    %p2426 = scmp.le.s32.totalorder 2, %s14
    // Predicated region
    $region57: #{pretrained_frozen_forward.1} parent=5 // pred_check
      %p2427 = pneg %p2426
    $region58: #{pretrained_frozen_forward.1} parent=5 // pred_check_branch
      %2429 = sbr.rel (%p2427) target = $region60
    $region59: #{pretrained_frozen_forward.1} parent=5 // pred_region
      %s2430 = ssub.s32 %s14, 2
      // Predicated region
      $region61: #{pretrained_frozen_forward.1} parent=59 // pred_check
        %p2431 = pneg %p216
      $region62: #{pretrained_frozen_forward.1} parent=59 // pred_check_branch
        %2433 = sbr.rel (%p2431) target = $region64
      $region63: #{pretrained_frozen_forward.1} parent=59 // pred_region
        %p2434 = scmp.lt.s32.totalorder %s20, 1
        %s2435 = scalar_select %p2434, %s20, 1
        %s2436 = scalar_lea.vmem %s8, %s2435
      $region64: #{pretrained_frozen_forward.1} parent=59 // pred_fallthru
        _
    $region60: #{pretrained_frozen_forward.1} parent=5 // pred_fallthru
      _
  $region6: #{pretrained_frozen_forward.1} parent=0 // loop_footer
    %s18 = sadd.s32 1, %s14
  $region7: #{pretrained_frozen_forward.1} parent=0 // loop_footer_branch
    %13 = sbr.rel target = $region3
  $region8: #{pretrained_frozen_forward.1} parent=0 // loop_exit
    _

</llo_original>
